<compile_context>
chip_gen: v5e
topology: v5e:2x2
jax: 0.10.0
libtpu: 0.0.40
codegen_flags: <defaults>
</compile_context>

<pallas_src>
import math
import jax
import jax.numpy as jnp
from jax.experimental import pallas as pl
from jax.experimental.pallas import tpu as pltpu

NEG_SLOPE = 0.2          # LeakyReLU slope used by PyG GATConv
MASK_BIAS = -1e30        # additive mask for non-edges / padding (Python float)
ATT_SLAB_W = 512         # lane width of the packed attention-weight slab
CST_SLAB_W = 256         # lane width of the packed constants/params slab


# ---------------------------------------------------------------------------
# Host-side packing: many small arrays -> one 8-row-aligned f32 slab.
# ---------------------------------------------------------------------------
class SlabPacker:
    def __init__(self, width):
        self.width = width
        self._parts = []
        self.layout = {}          # name -> (row0, rows, cols)  (Python ints)
        self._row = 0

    def add(self, name, arr):
        arr = jnp.asarray(arr, jnp.float32)
        rows, cols = arr.shape
        assert cols <= self.width, (name, cols, self.width)
        rows_pad = ((rows + 7) // 8) * 8
        buf = jnp.zeros((rows_pad, self.width), jnp.float32)
        buf = buf.at[:rows, :cols].set(arr)
        self._parts.append(buf)
        self.layout[name] = (self._row, rows, cols)
        self._row += rows_pad

    def finish(self):
        return jnp.concatenate(self._parts, axis=0), self.layout


# ---------------------------------------------------------------------------
# Host-side constant construction.
# ---------------------------------------------------------------------------
def expand_att(att, n, hn_pad):
    """[H,F] -> [H*F, hn_pad] with block[h*F+f, h*n+j] = att[h,f], 0 elsewhere."""
    H, F = att.shape
    blk = jnp.zeros((H * F, hn_pad), jnp.float32)
    for h in range(H):
        blk = blk.at[h * F:(h + 1) * F, h * n:(h + 1) * n].set(
            jnp.broadcast_to(att[h][:, None], (F, n)))
    return blk


def make_seg(H, F, n, hn_pad):
    """[hn_pad, H*F] with seg[h*n+j, h'*F+f] = (h == h'); also the block mask."""
    seg = jnp.zeros((hn_pad, H * F), jnp.float32)
    for h in range(H):
        seg = seg.at[h * n:(h + 1) * n, h * F:(h + 1) * F].set(1.0)
    return seg


def make_sel(n, hn_pad):
    """[n, hn_pad] with sel[i, h*n+j] = (i == j)."""
    return jnp.tile(jnp.eye(n, dtype=jnp.float32), (1, hn_pad // n))


def make_adj_slab(adj, H, n, hn_pad):
    """[n, hn_pad]: 0 on edges, MASK_BIAS on non-edges and padding columns."""
    bias = jnp.where(adj > 0, 0.0, MASK_BIAS).astype(jnp.float32)
    slab = jnp.full((n, hn_pad), MASK_BIAS, jnp.float32)
    return slab.at[:, :H * n].set(jnp.tile(bias, (1, H)))


def prepare_inputs(params, adj, cfg, n):
    """Pack all weights + constants into two lane-aligned slabs."""
    att_pk = SlabPacker(ATT_SLAB_W)
    cst_pk = SlabPacker(CST_SLAB_W)

    for H in sorted({c["heads"] for c in cfg}):
        c = next(c for c in cfg if c["heads"] == H)
        hn_pad, F = c["hn_pad"], c["f_out"]
        cst_pk.add(f"seg_H{H}", make_seg(H, F, n, hn_pad))     # seg == block mask
        cst_pk.add(f"sel_H{H}", make_sel(n, hn_pad))
        cst_pk.add(f"adjb_H{H}", make_adj_slab(adj, H, n, hn_pad))

    layer_params = [params["conv1"], params["conv2"], params["conv3"]]
    for li, (c, p) in enumerate(zip(cfg, layer_params)):
        hn_pad = c["hn_pad"]
        cst_pk.add(f"W{li}", p["W"])
        cst_pk.add(f"b{li}", p["bias"])
        att = jnp.concatenate([expand_att(p["att_dst"], n, hn_pad),
                               expand_att(p["att_src"], n, hn_pad)], axis=1)
        att_pk.add(f"att{li}", att)                            # [HF, 2*hn_pad]

    for c in cfg:
        if not c["concat"]:
            H, F = c["heads"], c["f_out"]
            cst_pk.add("mean", jnp.tile(jnp.eye(F, dtype=jnp.float32) / H, (H, 1)))
            break

    att_slab, att_layout = att_pk.finish()
    cst_slab, cst_layout = cst_pk.finish()
    return att_slab, cst_slab, att_layout, cst_layout


# ---------------------------------------------------------------------------
# Fused kernel: conv1 -> ReLU -> conv2 -> conv3 in a single pallas_call.
# ---------------------------------------------------------------------------
def _view(ref, entry):
    r0, rows, cols = entry
    return ref[pl.ds(r0, rows), pl.ds(0, cols)]


def make_fused_kernel(att_layout, cst_layout, cfg, n):
    def kernel(x_ref, att_ref, cst_ref, out_ref):
        f32 = jnp.float32
        feats = x_ref[...]                                     # [n, F_in]
        for li, c in enumerate(cfg):
            H, F, hn_pad = c["heads"], c["f_out"], c["hn_pad"]
            reps = hn_pad // n

            w    = _view(cst_ref, cst_layout[f"W{li}"])        # [F_in, HF]
            bias = _view(cst_ref, cst_layout[f"b{li}"])        # [1, HF] or [1, F]
            seg  = _view(cst_ref, cst_layout[f"seg_H{H}"])     # [hn_pad, HF]
            sel  = _view(cst_ref, cst_layout[f"sel_H{H}"])     # [n, hn_pad]
            adjb = _view(cst_ref, cst_layout[f"adjb_H{H}"])    # [n, hn_pad]
            att  = _view(att_ref, att_layout[f"att{li}"])      # [HF, 2*hn_pad]

            xw = jnp.dot(feats, w, preferred_element_type=f32)          # [n, HF]

            # fused dst|src score matmul; split at a 128-aligned lane boundary
            scores = jnp.dot(xw, att, preferred_element_type=f32)       # [n, 2*hn_pad]
            dst_slab = scores[:, :hn_pad]                               # s_dst[i,h]
            src_full = scores[:, hn_pad:2 * hn_pad]                     # s_src[i,h]
            src_row = jnp.sum(src_full * sel, axis=0, keepdims=True)    # s_src[j,h]

            e = dst_slab + src_row                                      # [n, hn_pad]
            e = jnp.where(e > 0, e, NEG_SLOPE * e)                      # LeakyReLU
            e = e + adjb                                                # mask non-edges
            m = jnp.max(e, axis=-1, keepdims=True)                      # row max
            p = jnp.exp(e - m)                                          # masked -> 0

            # per-head denominators broadcast to [n, HF] (one MXU matmul)
            denom = jnp.dot(p, seg, preferred_element_type=f32)         # [n, HF]

            # block-diagonal xw: sublane tile + full-width multiply by seg mask
            xw_blk = jnp.concatenate([xw] * reps, axis=0) * seg         # [hn_pad, HF]
            out_un = jnp.dot(p, xw_blk, preferred_element_type=f32)     # [n, HF]

            out = out_un / denom                                        # exact softmax norm
            if c["concat"]:
                out = out + bias
            else:
                mean = _view(cst_ref, cst_layout["mean"])               # [HF, F]
                out = jnp.dot(out, mean, preferred_element_type=f32) + bias
            if c["apply_relu"]:
                out = jnp.maximum(out, 0.0)
            feats = out

        out_ref[...] = feats                                            # [n, out_dim]

    return kernel


def model_forward(x, att_slab, cst_slab, att_layout, cst_layout, cfg, n):
    out_dim = cfg[-1]["f_out"]
    kernel = make_fused_kernel(att_layout, cst_layout, cfg, n)
    vmem = pl.BlockSpec(memory_space=pltpu.MemorySpace.VMEM)
    return pl.pallas_call(
        kernel,
        out_shape=jax.ShapeDtypeStruct((n, out_dim), jnp.float32),
        in_specs=[vmem, vmem, vmem],
        out_specs=vmem,
    )(x, att_slab, cst_slab)


# ---------------------------------------------------------------------------
# Parameter construction (deterministic, glorot-like).
# ---------------------------------------------------------------------------
def init_gat_params(key, in_dim, f_out, heads, concat):
    k1, k2, k3, k4 = jax.random.split(key, 4)
    W = jax.random.normal(k1, (in_dim, heads * f_out), jnp.float32) \
        * (1.0 / math.sqrt(in_dim))
    att_src = jax.random.normal(k2, (heads, f_out), jnp.float32) * 0.1
    att_dst = jax.random.normal(k3, (heads, f_out), jnp.float32) * 0.1
    bias_dim = heads * f_out if concat else f_out
    bias = jax.random.normal(k4, (1, bias_dim), jnp.float32) * 0.1
    return dict(W=W, att_src=att_src, att_dst=att_dst, bias=bias)


# ---------------------------------------------------------------------------
# Pure-JAX reference (same dense-GAT math) for a sanity check.
# ---------------------------------------------------------------------------
def ref_gat_layer(x, p, adj, heads, f_out, concat, apply_relu):
    xw = x @ p["W"]
    outs = []
    for h in range(heads):
        xw_h = xw[:, h * f_out:(h + 1) * f_out]
        s_src = xw_h @ p["att_src"][h]
        s_dst = xw_h @ p["att_dst"][h]
        e = s_dst[:, None] + s_src[None, :]
        e = jnp.where(e > 0, e, NEG_SLOPE * e)
        e = jnp.where(adj > 0, e, MASK_BIAS)
        a = jax.nn.softmax(e, axis=-1)
        outs.append(a @ xw_h)
    if concat:
        o = jnp.concatenate(outs, axis=-1) + p["bias"]
    else:
        o = sum(outs) / heads + p["bias"]
    return jnp.maximum(o, 0.0) if apply_relu else o


def ref_forward(x, adj, params, hidden_dim, output_dim, heads):
    h = ref_gat_layer(x, params["conv1"], adj, heads, hidden_dim, True, True)
    h = ref_gat_layer(h, params["conv2"], adj, heads, hidden_dim, True, False)
    return ref_gat_layer(h, params["conv3"], adj, 6, output_dim, False, False)


if __name__ == "__main__":
    N, E = 32, 96
    input_dim, hidden_dim, output_dim, heads = 16, 8, 8, 4

    key = jax.random.PRNGKey(0)
    kx, ke1, ke2, kp1, kp2, kp3 = jax.random.split(key, 6)

    # node features + random edge_index -> dense adjacency (with self-loops)
    x = jax.random.normal(kx, (N, input_dim), jnp.float32)
    src = jax.random.randint(ke1, (E,), 0, N)
    dst = jax.random.randint(ke2, (E,), 0, N)
    adj = jnp.zeros((N, N), jnp.float32).at[dst, src].set(1.0)
    adj = jnp.maximum(adj, jnp.eye(N, dtype=jnp.float32))    # add_self_loops=True

    params = {
        "conv1": init_gat_params(kp1, input_dim, hidden_dim, heads, True),
        "conv2": init_gat_params(kp2, hidden_dim * heads, hidden_dim, heads, True),
        "conv3": init_gat_params(kp3, hidden_dim * heads, output_dim, 6, False),
    }

    def rup128(v):
        return ((v + 127) // 128) * 128

    cfg = [
        dict(heads=heads, f_out=hidden_dim, concat=True,  apply_relu=True,
             hn_pad=rup128(heads * N)),                                  # conv1 + relu
        dict(heads=heads, f_out=hidden_dim, concat=True,  apply_relu=False,
             hn_pad=rup128(heads * N)),                                  # conv2
        dict(heads=6, f_out=output_dim, concat=False, apply_relu=False,
             hn_pad=rup128(6 * N)),                                      # conv3
    ]

    att_slab, cst_slab, att_layout, cst_layout = prepare_inputs(params, adj, cfg, N)

    out = model_forward(x, att_slab, cst_slab, att_layout, cst_layout, cfg, N)
    out = jax.block_until_ready(out)

    ref = ref_forward(x, adj, params, hidden_dim, output_dim, heads)
    assert out.shape == (N, output_dim)
    max_err = float(jnp.max(jnp.abs(out - ref)))
    assert jnp.allclose(out, ref, atol=2e-3, rtol=2e-3), max_err

    print("KERNEL_OK")
</pallas_src>

<mosaic_0001>
module attributes {stable_mosaic.version = 11 : i64} {
  func.func @kernel(%arg0: memref<32x16xf32, #tpu.memory_space<vmem>>, %arg1: memref<112x512xf32, #tpu.memory_space<vmem>>, %arg2: memref<664x256xf32, #tpu.memory_space<vmem>>, %arg3: memref<32x8xf32, #tpu.memory_space<vmem>>) attributes {dimension_semantics = [], scalar_prefetch = 0 : i64, scratch_operands = 0 : i64, tpu.core_type = #tpu.core_type<tc>} {
    %c0 = arith.constant 0 : index
    %c0_0 = arith.constant 0 : index
    %0 = vector.load %arg0[%c0, %c0_0] : memref<32x16xf32, #tpu.memory_space<vmem>>, vector<32x16xf32>
    %c512 = arith.constant 512 : index
    %c0_1 = arith.constant 0 : index
    %1 = vector.load %arg2[%c512, %c0_1] : memref<664x256xf32, #tpu.memory_space<vmem>>, vector<16x32xf32>
    %c528 = arith.constant 528 : index
    %c0_2 = arith.constant 0 : index
    %2 = vector.load %arg2[%c528, %c0_2] : memref<664x256xf32, #tpu.memory_space<vmem>>, vector<1x32xf32>
    %c0_3 = arith.constant 0 : index
    %c0_4 = arith.constant 0 : index
    %3 = vector.load %arg2[%c0_3, %c0_4] : memref<664x256xf32, #tpu.memory_space<vmem>>, vector<128x32xf32>
    %c128 = arith.constant 128 : index
    %c0_5 = arith.constant 0 : index
    %4 = vector.load %arg2[%c128, %c0_5] : memref<664x256xf32, #tpu.memory_space<vmem>>, vector<32x128xf32>
    %c160 = arith.constant 160 : index
    %c0_6 = arith.constant 0 : index
    %5 = vector.load %arg2[%c160, %c0_6] : memref<664x256xf32, #tpu.memory_space<vmem>>, vector<32x128xf32>
    %c0_7 = arith.constant 0 : index
    %c0_8 = arith.constant 0 : index
    %6 = vector.load %arg1[%c0_7, %c0_8] : memref<112x512xf32, #tpu.memory_space<vmem>>, vector<32x256xf32>
    %cst = arith.constant dense<0.000000e+00> : vector<32x32xf32>
    %7 = tpu.matmul %0, %1, %cst {dimension_numbers = #tpu.dot_dimension_numbers<[1], [0], [0], [1], [0, 0, 1, 1], [], []>} : vector<32x16xf32>, vector<16x32xf32>, vector<32x32xf32> -> vector<32x32xf32>
    %cst_9 = arith.constant dense<0.000000e+00> : vector<32x256xf32>
    %8 = tpu.matmul %7, %6, %cst_9 {dimension_numbers = #tpu.dot_dimension_numbers<[1], [0], [0], [1], [0, 0, 1, 1], [], []>} : vector<32x32xf32>, vector<32x256xf32>, vector<32x256xf32> -> vector<32x256xf32>
    %9 = vector.extract_strided_slice %8 {offsets = [0, 0], sizes = [32, 128], strides = [1, 1]} : vector<32x256xf32> to vector<32x128xf32>
    %10 = vector.extract_strided_slice %8 {offsets = [0, 128], sizes = [32, 128], strides = [1, 1]} : vector<32x256xf32> to vector<32x128xf32>
    %11 = arith.mulf %10, %4 : vector<32x128xf32>
    %cst_10 = arith.constant dense<0.000000e+00> : vector<128xf32>
    %12 = vector.multi_reduction <add>, %11, %cst_10 [0] : vector<32x128xf32> to vector<128xf32>
    %13 = vector.shape_cast %12 : vector<128xf32> to vector<1x128xf32>
    %14 = vector.broadcast %13 : vector<1x128xf32> to vector<32x128xf32>
    %15 = arith.addf %9, %14 : vector<32x128xf32>
    %cst_11 = arith.constant 0.000000e+00 : f32
    %16 = vector.broadcast %cst_11 : f32 to vector<32x128xf32>
    %17 = arith.cmpf ogt, %15, %16 : vector<32x128xf32>
    %cst_12 = arith.constant 2.000000e-01 : f32
    %18 = vector.broadcast %cst_12 : f32 to vector<32x128xf32>
    %19 = arith.mulf %18, %15 : vector<32x128xf32>
    %20 = arith.select %17, %15, %19 : vector<32x128xi1>, vector<32x128xf32>
    %21 = arith.addf %20, %5 : vector<32x128xf32>
    %cst_13 = arith.constant dense<0xFF800000> : vector<32xf32>
    %22 = vector.multi_reduction <maximumf>, %21, %cst_13 [1] : vector<32x128xf32> to vector<32xf32>
    %23 = vector.shape_cast %22 : vector<32xf32> to vector<32x1xf32>
    %24 = vector.broadcast %23 : vector<32x1xf32> to vector<32x128xf32>
    %25 = arith.subf %21, %24 : vector<32x128xf32>
    %26 = math.exp %25 : vector<32x128xf32>
    %cst_14 = arith.constant dense<0.000000e+00> : vector<32x32xf32>
    %27 = tpu.matmul %26, %3, %cst_14 {dimension_numbers = #tpu.dot_dimension_numbers<[1], [0], [0], [1], [0, 0, 1, 1], [], []>} : vector<32x128xf32>, vector<128x32xf32>, vector<32x32xf32> -> vector<32x32xf32>
    %28 = tpu.concatenate %7, %7, %7, %7 in 0 : vector<32x32xf32>, vector<32x32xf32>, vector<32x32xf32>, vector<32x32xf32> -> vector<128x32xf32>
    %29 = arith.mulf %28, %3 : vector<128x32xf32>
    %cst_15 = arith.constant dense<0.000000e+00> : vector<32x32xf32>
    %30 = tpu.matmul %26, %29, %cst_15 {dimension_numbers = #tpu.dot_dimension_numbers<[1], [0], [0], [1], [0, 0, 1, 1], [], []>} : vector<32x128xf32>, vector<128x32xf32>, vector<32x32xf32> -> vector<32x32xf32>
    %31 = arith.divf %30, %27 : vector<32x32xf32>
    %32 = vector.broadcast %2 : vector<1x32xf32> to vector<32x32xf32>
    %33 = arith.addf %31, %32 : vector<32x32xf32>
    %cst_16 = arith.constant 0.000000e+00 : f32
    %34 = vector.broadcast %cst_16 : f32 to vector<32x32xf32>
    %35 = arith.maximumf %33, %34 : vector<32x32xf32>
    %c536 = arith.constant 536 : index
    %c0_17 = arith.constant 0 : index
    %36 = vector.load %arg2[%c536, %c0_17] : memref<664x256xf32, #tpu.memory_space<vmem>>, vector<32x32xf32>
    %c568 = arith.constant 568 : index
    %c0_18 = arith.constant 0 : index
    %37 = vector.load %arg2[%c568, %c0_18] : memref<664x256xf32, #tpu.memory_space<vmem>>, vector<1x32xf32>
    %c0_19 = arith.constant 0 : index
    %c0_20 = arith.constant 0 : index
    %38 = vector.load %arg2[%c0_19, %c0_20] : memref<664x256xf32, #tpu.memory_space<vmem>>, vector<128x32xf32>
    %c128_21 = arith.constant 128 : index
    %c0_22 = arith.constant 0 : index
    %39 = vector.load %arg2[%c128_21, %c0_22] : memref<664x256xf32, #tpu.memory_space<vmem>>, vector<32x128xf32>
    %c160_23 = arith.constant 160 : index
    %c0_24 = arith.constant 0 : index
    %40 = vector.load %arg2[%c160_23, %c0_24] : memref<664x256xf32, #tpu.memory_space<vmem>>, vector<32x128xf32>
    %c32 = arith.constant 32 : index
    %c0_25 = arith.constant 0 : index
    %41 = vector.load %arg1[%c32, %c0_25] : memref<112x512xf32, #tpu.memory_space<vmem>>, vector<32x256xf32>
    %cst_26 = arith.constant dense<0.000000e+00> : vector<32x32xf32>
    %42 = tpu.matmul %35, %36, %cst_26 {dimension_numbers = #tpu.dot_dimension_numbers<[1], [0], [0], [1], [0, 0, 1, 1], [], []>} : vector<32x32xf32>, vector<32x32xf32>, vector<32x32xf32> -> vector<32x32xf32>
    %cst_27 = arith.constant dense<0.000000e+00> : vector<32x256xf32>
    %43 = tpu.matmul %42, %41, %cst_27 {dimension_numbers = #tpu.dot_dimension_numbers<[1], [0], [0], [1], [0, 0, 1, 1], [], []>} : vector<32x32xf32>, vector<32x256xf32>, vector<32x256xf32> -> vector<32x256xf32>
    %44 = vector.extract_strided_slice %43 {offsets = [0, 0], sizes = [32, 128], strides = [1, 1]} : vector<32x256xf32> to vector<32x128xf32>
    %45 = vector.extract_strided_slice %43 {offsets = [0, 128], sizes = [32, 128], strides = [1, 1]} : vector<32x256xf32> to vector<32x128xf32>
    %46 = arith.mulf %45, %39 : vector<32x128xf32>
    %cst_28 = arith.constant dense<0.000000e+00> : vector<128xf32>
    %47 = vector.multi_reduction <add>, %46, %cst_28 [0] : vector<32x128xf32> to vector<128xf32>
    %48 = vector.shape_cast %47 : vector<128xf32> to vector<1x128xf32>
    %49 = vector.broadcast %48 : vector<1x128xf32> to vector<32x128xf32>
    %50 = arith.addf %44, %49 : vector<32x128xf32>
    %cst_29 = arith.constant 0.000000e+00 : f32
    %51 = vector.broadcast %cst_29 : f32 to vector<32x128xf32>
    %52 = arith.cmpf ogt, %50, %51 : vector<32x128xf32>
    %cst_30 = arith.constant 2.000000e-01 : f32
    %53 = vector.broadcast %cst_30 : f32 to vector<32x128xf32>
    %54 = arith.mulf %53, %50 : vector<32x128xf32>
    %55 = arith.select %52, %50, %54 : vector<32x128xi1>, vector<32x128xf32>
    %56 = arith.addf %55, %40 : vector<32x128xf32>
    %cst_31 = arith.constant dense<0xFF800000> : vector<32xf32>
    %57 = vector.multi_reduction <maximumf>, %56, %cst_31 [1] : vector<32x128xf32> to vector<32xf32>
    %58 = vector.shape_cast %57 : vector<32xf32> to vector<32x1xf32>
    %59 = vector.broadcast %58 : vector<32x1xf32> to vector<32x128xf32>
    %60 = arith.subf %56, %59 : vector<32x128xf32>
    %61 = math.exp %60 : vector<32x128xf32>
    %cst_32 = arith.constant dense<0.000000e+00> : vector<32x32xf32>
    %62 = tpu.matmul %61, %38, %cst_32 {dimension_numbers = #tpu.dot_dimension_numbers<[1], [0], [0], [1], [0, 0, 1, 1], [], []>} : vector<32x128xf32>, vector<128x32xf32>, vector<32x32xf32> -> vector<32x32xf32>
    %63 = tpu.concatenate %42, %42, %42, %42 in 0 : vector<32x32xf32>, vector<32x32xf32>, vector<32x32xf32>, vector<32x32xf32> -> vector<128x32xf32>
    %64 = arith.mulf %63, %38 : vector<128x32xf32>
    %cst_33 = arith.constant dense<0.000000e+00> : vector<32x32xf32>
    %65 = tpu.matmul %61, %64, %cst_33 {dimension_numbers = #tpu.dot_dimension_numbers<[1], [0], [0], [1], [0, 0, 1, 1], [], []>} : vector<32x128xf32>, vector<128x32xf32>, vector<32x32xf32> -> vector<32x32xf32>
    %66 = arith.divf %65, %62 : vector<32x32xf32>
    %67 = vector.broadcast %37 : vector<1x32xf32> to vector<32x32xf32>
    %68 = arith.addf %66, %67 : vector<32x32xf32>
    %c576 = arith.constant 576 : index
    %c0_34 = arith.constant 0 : index
    %69 = vector.load %arg2[%c576, %c0_34] : memref<664x256xf32, #tpu.memory_space<vmem>>, vector<32x48xf32>
    %c608 = arith.constant 608 : index
    %c0_35 = arith.constant 0 : index
    %70 = vector.load %arg2[%c608, %c0_35] : memref<664x256xf32, #tpu.memory_space<vmem>>, vector<1x8xf32>
    %c192 = arith.constant 192 : index
    %c0_36 = arith.constant 0 : index
    %71 = vector.load %arg2[%c192, %c0_36] : memref<664x256xf32, #tpu.memory_space<vmem>>, vector<256x48xf32>
    %c448 = arith.constant 448 : index
    %c0_37 = arith.constant 0 : index
    %72 = vector.load %arg2[%c448, %c0_37] : memref<664x256xf32, #tpu.memory_space<vmem>>, vector<32x256xf32>
    %c480 = arith.constant 480 : index
    %c0_38 = arith.constant 0 : index
    %73 = vector.load %arg2[%c480, %c0_38] : memref<664x256xf32, #tpu.memory_space<vmem>>, vector<32x256xf32>
    %c64 = arith.constant 64 : index
    %c0_39 = arith.constant 0 : index
    %74 = vector.load %arg1[%c64, %c0_39] : memref<112x512xf32, #tpu.memory_space<vmem>>, vector<48x512xf32>
    %cst_40 = arith.constant dense<0.000000e+00> : vector<32x48xf32>
    %75 = tpu.matmul %68, %69, %cst_40 {dimension_numbers = #tpu.dot_dimension_numbers<[1], [0], [0], [1], [0, 0, 1, 1], [], []>} : vector<32x32xf32>, vector<32x48xf32>, vector<32x48xf32> -> vector<32x48xf32>
    %cst_41 = arith.constant dense<0.000000e+00> : vector<32x512xf32>
    %76 = tpu.matmul %75, %74, %cst_41 {dimension_numbers = #tpu.dot_dimension_numbers<[1], [0], [0], [1], [0, 0, 1, 1], [], []>} : vector<32x48xf32>, vector<48x512xf32>, vector<32x512xf32> -> vector<32x512xf32>
    %77 = vector.extract_strided_slice %76 {offsets = [0, 0], sizes = [32, 256], strides = [1, 1]} : vector<32x512xf32> to vector<32x256xf32>
    %78 = vector.extract_strided_slice %76 {offsets = [0, 256], sizes = [32, 256], strides = [1, 1]} : vector<32x512xf32> to vector<32x256xf32>
    %79 = arith.mulf %78, %72 : vector<32x256xf32>
    %cst_42 = arith.constant dense<0.000000e+00> : vector<256xf32>
    %80 = vector.multi_reduction <add>, %79, %cst_42 [0] : vector<32x256xf32> to vector<256xf32>
    %81 = vector.shape_cast %80 : vector<256xf32> to vector<1x256xf32>
    %82 = vector.broadcast %81 : vector<1x256xf32> to vector<32x256xf32>
    %83 = arith.addf %77, %82 : vector<32x256xf32>
    %cst_43 = arith.constant 0.000000e+00 : f32
    %84 = vector.broadcast %cst_43 : f32 to vector<32x256xf32>
    %85 = arith.cmpf ogt, %83, %84 : vector<32x256xf32>
    %cst_44 = arith.constant 2.000000e-01 : f32
    %86 = vector.broadcast %cst_44 : f32 to vector<32x256xf32>
    %87 = arith.mulf %86, %83 : vector<32x256xf32>
    %88 = arith.select %85, %83, %87 : vector<32x256xi1>, vector<32x256xf32>
    %89 = arith.addf %88, %73 : vector<32x256xf32>
    %cst_45 = arith.constant dense<0xFF800000> : vector<32xf32>
    %90 = vector.multi_reduction <maximumf>, %89, %cst_45 [1] : vector<32x256xf32> to vector<32xf32>
    %91 = vector.shape_cast %90 : vector<32xf32> to vector<32x1xf32>
    %92 = vector.broadcast %91 : vector<32x1xf32> to vector<32x256xf32>
    %93 = arith.subf %89, %92 : vector<32x256xf32>
    %94 = math.exp %93 : vector<32x256xf32>
    %cst_46 = arith.constant dense<0.000000e+00> : vector<32x48xf32>
    %95 = tpu.matmul %94, %71, %cst_46 {dimension_numbers = #tpu.dot_dimension_numbers<[1], [0], [0], [1], [0, 0, 1, 1], [], []>} : vector<32x256xf32>, vector<256x48xf32>, vector<32x48xf32> -> vector<32x48xf32>
    %96 = tpu.concatenate %75, %75, %75, %75, %75, %75, %75, %75 in 0 : vector<32x48xf32>, vector<32x48xf32>, vector<32x48xf32>, vector<32x48xf32>, vector<32x48xf32>, vector<32x48xf32>, vector<32x48xf32>, vector<32x48xf32> -> vector<256x48xf32>
    %97 = arith.mulf %96, %71 : vector<256x48xf32>
    %cst_47 = arith.constant dense<0.000000e+00> : vector<32x48xf32>
    %98 = tpu.matmul %94, %97, %cst_47 {dimension_numbers = #tpu.dot_dimension_numbers<[1], [0], [0], [1], [0, 0, 1, 1], [], []>} : vector<32x256xf32>, vector<256x48xf32>, vector<32x48xf32> -> vector<32x48xf32>
    %99 = arith.divf %98, %95 : vector<32x48xf32>
    %c616 = arith.constant 616 : index
    %c0_48 = arith.constant 0 : index
    %100 = vector.load %arg2[%c616, %c0_48] : memref<664x256xf32, #tpu.memory_space<vmem>>, vector<48x8xf32>
    %cst_49 = arith.constant dense<0.000000e+00> : vector<32x8xf32>
    %101 = tpu.matmul %99, %100, %cst_49 {dimension_numbers = #tpu.dot_dimension_numbers<[1], [0], [0], [1], [0, 0, 1, 1], [], []>} : vector<32x48xf32>, vector<48x8xf32>, vector<32x8xf32> -> vector<32x8xf32>
    %102 = vector.broadcast %70 : vector<1x8xf32> to vector<32x8xf32>
    %103 = arith.addf %101, %102 : vector<32x8xf32>
    %c0_50 = arith.constant 0 : index
    %c0_51 = arith.constant 0 : index
    %104 = vector.load %arg3[%c0_50, %c0_51] : memref<32x8xf32, #tpu.memory_space<vmem>>, vector<32x8xf32>
    tpu.vector_store %arg3[%c0_50, %c0_51], %103 {strides = array<i32>} : memref<32x8xf32, #tpu.memory_space<vmem>>, vector<32x8xf32>,
    return
  }
}

</mosaic_0001>

<llo_original>
// kernel: tpu_custom_call.1
$region0: #{tpu_custom_call.1}
  #allocation0 [shape = 'u32[]', space=smem, size = 0x4, offset = 0x4, fixed_abs, tag = 'smem constant byte address 0x4 - core index']
  #allocation1 [shape = 'u32[72,128]{1,0:T(1,128)}', space=vmem, size = 0x9000, scoped, tag = 'internal scratch']
  %s0 = inlined_call_operand.vmem [shape: f32[32,16], index: 0, kind: input, shape index: {}]
  %s1 = inlined_call_operand.hbm [shape: f32[112,512], index: 1, kind: input, shape index: {}]
  %s2 = inlined_call_operand.hbm [shape: f32[664,256], index: 2, kind: input, shape index: {}]
  %s3 = inlined_call_operand.vmem [shape: f32[32,8], index: 3, kind: output, shape index: {}]
  %s4 = sld [smem:[#allocation0]]
  $region30: #{tpu_custom_call.1} parent=0
    _
  %s6 = ssub.s32 1, %s4
  %s7 = scalar_select 0, %s6, %s4
  $region1: #{tpu_custom_call.1} parent=0
    #allocation2 [shape = 'u8[229376]{0}', space=vmem, size = 0x38000, scoped, tag = 'input window, operand 1, single buffered']
    #allocation3 [shape = 's32[1]{0}', space=sflag, size = 0x4, scoped, tag = 'scoped memory for tpu_custom_call.1']
    #allocation4 [shape = 'u8[679936]{0}', space=vmem, size = 0xa6000, scoped, tag = 'input window, operand 2, single buffered']
    #allocation5 [shape = 's32[1]{0}', space=sflag, size = 0x4, scoped, tag = 'scoped memory for tpu_custom_call.1']
    %8 = vsyncpa [#allocation3], 0
    %9 = vsyncpa [#allocation5], 0
    // Predicated region
    $region2: #{tpu_custom_call.1} parent=1 // pred_check
      _
    $region3: #{tpu_custom_call.1} parent=1 // pred_check_branch
      %11 = sbr.rel (0) target = $region5
    $region4: #{tpu_custom_call.1} parent=1 // pred_region
      _
    $region5: #{tpu_custom_call.1} parent=1 // pred_fallthru
      _
    // Predicated region
    $region6: #{tpu_custom_call.1} parent=1 // pred_check
      _
    $region7: #{tpu_custom_call.1} parent=1 // pred_check_branch
      %13 = sbr.rel (0) target = $region9
    $region8: #{tpu_custom_call.1} parent=1 // pred_region
      %15 = vsyncadd [#allocation3], 0
      %s16 = sshll.u32 %s1, 4
      %s17 = int_to_ptr.hbm [resolvable:$true] %s16
      %s18 = sshll.u32 [#allocation2], 4
      %s19 = int_to_ptr.vmem [resolvable:$true] %s18
      %24 = dma.hbm_to_vmem [thread:$0]  %s17, 7168, %s19, [#allocation3], 512, 512, 32
    $region9: #{tpu_custom_call.1} parent=1 // pred_fallthru
      _
    // Predicated region
    $region10: #{tpu_custom_call.1} parent=1 // pred_check
      _
    $region11: #{tpu_custom_call.1} parent=1 // pred_check_branch
      %26 = sbr.rel (0) target = $region13
    $region12: #{tpu_custom_call.1} parent=1 // pred_region
      %28 = vsyncadd [#allocation5], 0
      %s29 = sshll.u32 %s2, 4
      %s30 = int_to_ptr.hbm [resolvable:$true] %s29
      %s31 = sshll.u32 [#allocation4], 4
      %s32 = int_to_ptr.vmem [resolvable:$true] %s31
      %37 = dma.hbm_to_vmem [thread:$0]  %s30, 21248, %s32, [#allocation5], 256, 256, 16
    $region13: #{tpu_custom_call.1} parent=1 // pred_fallthru
      _
    // Predicated region
    $region14: #{tpu_custom_call.1} parent=1 // pred_check
      _
    $region15: #{tpu_custom_call.1} parent=1 // pred_check_branch
      %39 = sbr.rel (0) target = $region17
    $region16: #{tpu_custom_call.1} parent=1 // pred_region
      %41 = dma.done [#allocation3], 7168
    $region17: #{tpu_custom_call.1} parent=1 // pred_fallthru
      _
    // Predicated region
    $region18: #{tpu_custom_call.1} parent=1 // pred_check
      _
    $region19: #{tpu_custom_call.1} parent=1 // pred_check_branch
      %43 = sbr.rel (0) target = $region21
    $region20: #{tpu_custom_call.1} parent=1 // pred_region
      %45 = dma.done [#allocation5], 21248
    $region21: #{tpu_custom_call.1} parent=1 // pred_fallthru
      _
    %v46 = vld [vmem:[%s0] sm:$0xff]
    %v47 = vld [vmem:[%s0 + $0x8] sm:$0xff]
    %v48 = vld [vmem:[%s0 + $0x10] sm:$0xff]
    %v49 = vld [vmem:[%s0 + $0x18] sm:$0xff]
    %v50 = vld [vmem:[#allocation4 + $0x400] sm:$0xff]
    %v51 = vld [vmem:[#allocation4 + $0x410] sm:$0xff]
    %v52 = vld [vmem:[#allocation4 + $0x420] ss:$0 sm:$0xff]
    %v53 = vld [vmem:[#allocation4] sm:$0xff]
    %v54 = vld [vmem:[#allocation4 + $0x10] sm:$0xff]
    %v55 = vld [vmem:[#allocation4 + $0x20] sm:$0xff]
    %v56 = vld [vmem:[#allocation4 + $0x30] sm:$0xff]
    %v57 = vld [vmem:[#allocation4 + $0x40] sm:$0xff]
    %v58 = vld [vmem:[#allocation4 + $0x50] sm:$0xff]
    %v59 = vld [vmem:[#allocation4 + $0x60] sm:$0xff]
    %v60 = vld [vmem:[#allocation4 + $0x70] sm:$0xff]
    %v61 = vld [vmem:[#allocation4 + $0x80] sm:$0xff]
    %v62 = vld [vmem:[#allocation4 + $0x90] sm:$0xff]
    %v63 = vld [vmem:[#allocation4 + $0xa0] sm:$0xff]
    %v64 = vld [vmem:[#allocation4 + $0xb0] sm:$0xff]
    %v65 = vld [vmem:[#allocation4 + $0xc0] sm:$0xff]
    %v66 = vld [vmem:[#allocation4 + $0xd0] sm:$0xff]
    %v67 = vld [vmem:[#allocation4 + $0xe0] sm:$0xff]
    %v68 = vld [vmem:[#allocation4 + $0xf0] sm:$0xff]
    %v69 = vld [vmem:[#allocation4 + $0x100] sm:$0xff]
    %v70 = vld [vmem:[#allocation4 + $0x110] sm:$0xff]
    %v71 = vld [vmem:[#allocation4 + $0x120] sm:$0xff]
    %v72 = vld [vmem:[#allocation4 + $0x130] sm:$0xff]
    %v73 = vld [vmem:[#allocation4 + $0x140] sm:$0xff]
    %v74 = vld [vmem:[#allocation4 + $0x150] sm:$0xff]
    %v75 = vld [vmem:[#allocation4 + $0x160] sm:$0xff]
    %v76 = vld [vmem:[#allocation4 + $0x170] sm:$0xff]
    %v77 = vld [vmem:[#allocation2] sm:$0xff]
    %v78 = vld [vmem:[#allocation2 + $0x8] sm:$0xff]
    %v79 = vld [vmem:[#allocation2 + $0x20] sm:$0xff]
    %v80 = vld [vmem:[#allocation2 + $0x28] sm:$0xff]
    %v81 = vld [vmem:[#allocation2 + $0x40] sm:$0xff]
    %v82 = vld [vmem:[#allocation2 + $0x48] sm:$0xff]
    %v83 = vld [vmem:[#allocation2 + $0x60] sm:$0xff]
    %v84 = vld [vmem:[#allocation2 + $0x68] sm:$0xff]
    %vm85 = vcmask 130048
    %v87 = vsel %vm85, %v46, 0
    %v90 = vsel %vm85, %v47, 0
    %v93 = vsel %vm85, %v48, 0
    %v96 = vsel %vm85, %v49, 0
    %98 = vmatpush.msra.mxu0 0.0
    %99 = vmatpush.msra.mxu0 0.0
    %100 = vmatpush.msra.mxu0 0.0
    %101 = vmatpush.msra.mxu0 0.0
    %102 = vmatpush.msra.mxu0 0.0
    %103 = vmatpush.msra.mxu0 0.0
    %104 = vmatpush.msra.mxu0 0.0
    %105 = vmatpush.msra.mxu0 0.0
    %106 = vmatpush.msra.mxu0 0.0
    %107 = vmatpush.msra.mxu0 0.0
    %108 = vmatpush.msra.mxu0 0.0
    %109 = vmatpush.msra.mxu0 0.0
    %110 = vmatpush.msra.mxu0 0.0
    %111 = vmatpush.msra.mxu0 0.0
    %112 = vmatpush.msra.mxu0 %v51
    %113 = vmatpush.msra.mxu0 %v50
    %114 = vmatmul.f32.gmra.mxu0 %v87
    %v115 = vpop.f32.mrf.mxu0
    %v116 = vadd.f32 0.0, %v115
    %117 = vmatmul.f32.gmra.mxu0 %v90
    %v118 = vpop.f32.mrf.mxu0
    %v119 = vadd.f32 0.0, %v118
    %120 = vmatmul.f32.gmra.mxu0 %v93
    %v121 = vpop.f32.mrf.mxu0
    %v122 = vadd.f32 0.0, %v121
    %123 = vmatmul.f32.gmra.mxu0 %v96
    %v124 = vpop.f32.mrf.mxu0
    %v125 = vadd.f32 0.0, %v124
    %126 = vdwg.mxu0
    %vm127 = vcmask 261120
    %v129 = vsel %vm127, %v116, 0
    %v132 = vsel %vm127, %v119, 0
    %v135 = vsel %vm127, %v122, 0
    %v138 = vsel %vm127, %v125, 0
    %140 = vmatpush.msra.mxu0 0.0
    %141 = vmatpush.msra.mxu0 0.0
    %142 = vmatpush.msra.mxu0 0.0
    %143 = vmatpush.msra.mxu0 0.0
    %144 = vmatpush.msra.mxu0 0.0
    %145 = vmatpush.msra.mxu0 0.0
    %146 = vmatpush.msra.mxu0 0.0
    %147 = vmatpush.msra.mxu0 0.0
    %148 = vmatpush.msra.mxu0 0.0
    %149 = vmatpush.msra.mxu0 0.0
    %150 = vmatpush.msra.mxu0 0.0
    %151 = vmatpush.msra.mxu0 0.0
    %152 = vmatpush.msra.mxu0 %v83
    %153 = vmatpush.msra.mxu0 %v81
    %154 = vmatpush.msra.mxu0 %v79
    %155 = vmatpush.msra.mxu0 %v77
    %156 = vmatmul.f32.gmra.mxu0 %v129
    %v157 = vpop.f32.mrf.mxu0
    %v158 = vadd.f32 0.0, %v157
    %159 = vmatmul.f32.gmra.mxu0 %v132
    %v160 = vpop.f32.mrf.mxu0
    %v161 = vadd.f32 0.0, %v160
    %162 = vmatmul.f32.gmra.mxu0 %v135
    %v163 = vpop.f32.mrf.mxu0
    %v164 = vadd.f32 0.0, %v163
    %165 = vmatmul.f32.gmra.mxu0 %v138
    %v166 = vpop.f32.mrf.mxu0
    %v167 = vadd.f32 0.0, %v166
    %168 = vdwg.mxu0
    %169 = vmatpush.msra.mxu0 0.0
    %170 = vmatpush.msra.mxu0 0.0
    %171 = vmatpush.msra.mxu0 0.0
    %172 = vmatpush.msra.mxu0 0.0
    %173 = vmatpush.msra.mxu0 0.0
    %174 = vmatpush.msra.mxu0 0.0
    %175 = vmatpush.msra.mxu0 0.0
    %176 = vmatpush.msra.mxu0 0.0
    %177 = vmatpush.msra.mxu0 0.0
    %178 = vmatpush.msra.mxu0 0.0
    %179 = vmatpush.msra.mxu0 0.0
    %180 = vmatpush.msra.mxu0 0.0
    %181 = vmatpush.msra.mxu0 %v84
    %182 = vmatpush.msra.mxu0 %v82
    %183 = vmatpush.msra.mxu0 %v80
    %184 = vmatpush.msra.mxu0 %v78
    %185 = vmatmul.f32.gmra.mxu0 %v129
    %v186 = vpop.f32.mrf.mxu0
    %v187 = vadd.f32 0.0, %v186
    %188 = vmatmul.f32.gmra.mxu0 %v132
    %v189 = vpop.f32.mrf.mxu0
    %v190 = vadd.f32 0.0, %v189
    %191 = vmatmul.f32.gmra.mxu0 %v135
    %v192 = vpop.f32.mrf.mxu0
    %v193 = vadd.f32 0.0, %v192
    %194 = vmatmul.f32.gmra.mxu0 %v138
    %v195 = vpop.f32.mrf.mxu0
    %v196 = vadd.f32 0.0, %v195
    %197 = vdwg.mxu0
    %v198 = vmul.f32 %v187, %v69
    %v199 = vmul.f32 %v190, %v70
    %v200 = vmul.f32 %v193, %v71
    %v201 = vmul.f32 %v196, %v72
    %v202 = vadd.f32 %v198, %v199
    %v203 = vadd.f32 %v202, %v200
    %v204 = vadd.f32 %v203, %v201
    %v205 = vrot.slane %v204, 4
    %v206 = vadd.f32 %v204, %v205
    %v207 = vrot.slane %v206, 2
    %v208 = vadd.f32 %v206, %v207
    %v209 = vrot.slane %v208, 1
    %v210 = vadd.f32 %v208, %v209
    %v211 = vadd.f32 %v158, %v210
    %v212 = vadd.f32 %v161, %v210
    %v213 = vadd.f32 %v164, %v210
    %v214 = vadd.f32 %v167, %v210
    %vm215 = vcmp.gt.f32.partialorder %v211, 0.0
    %vm216 = vcmp.gt.f32.partialorder %v212, 0.0
    %vm217 = vcmp.gt.f32.partialorder %v213, 0.0
    %vm218 = vcmp.gt.f32.partialorder %v214, 0.0
    %v219 = vmul.f32 %v211, 0.2
    %v220 = vmul.f32 %v212, 0.2
    %v221 = vmul.f32 %v213, 0.2
    %v222 = vmul.f32 %v214, 0.2
    %v223 = vsel %vm215, %v211, %v219
    %v224 = vsel %vm216, %v212, %v220
    %v225 = vsel %vm217, %v213, %v221
    %v226 = vsel %vm218, %v214, %v222
    %v227 = vadd.f32 %v223, %v73
    %v228 = vadd.f32 %v224, %v74
    %v229 = vadd.f32 %v225, %v75
    %v230 = vadd.f32 %v226, %v76
    %231 = vmax.xlane.f32.xlu0 %v227
    %v232 = vpop.xlane.xlu0 %231
    %233 = vmax.xlane.f32.xlu0 %v228
    %v234 = vpop.xlane.xlu0 %233
    %235 = vmax.xlane.f32.xlu0 %v229
    %v236 = vpop.xlane.xlu0 %235
    %237 = vmax.xlane.f32.xlu0 %v230
    %v238 = vpop.xlane.xlu0 %237
    %v239 = vsub.f32 %v227, %v232
    %v240 = vsub.f32 %v228, %v234
    %v241 = vsub.f32 %v229, %v236
    %v242 = vsub.f32 %v230, %v238
    %v243 = vmul.f32 %v239, 1.442695
    %v244 = vpow.pop %v243
    %v245 = vmul.f32 %v240, 1.442695
    %v246 = vpow.pop %v245
    %v247 = vmul.f32 %v241, 1.442695
    %v248 = vpow.pop %v247
    %v249 = vmul.f32 %v242, 1.442695
    %v250 = vpow.pop %v249
    %251 = vmatpush.msra.mxu0 %v68
    %252 = vmatpush.msra.mxu0 %v67
    %253 = vmatpush.msra.mxu0 %v66
    %254 = vmatpush.msra.mxu0 %v65
    %255 = vmatpush.msra.mxu0 %v64
    %256 = vmatpush.msra.mxu0 %v63
    %257 = vmatpush.msra.mxu0 %v62
    %258 = vmatpush.msra.mxu0 %v61
    %259 = vmatpush.msra.mxu0 %v60
    %260 = vmatpush.msra.mxu0 %v59
    %261 = vmatpush.msra.mxu0 %v58
    %262 = vmatpush.msra.mxu0 %v57
    %263 = vmatpush.msra.mxu0 %v56
    %264 = vmatpush.msra.mxu0 %v55
    %265 = vmatpush.msra.mxu0 %v54
    %266 = vmatpush.msra.mxu0 %v53
    %267 = vmatmul.f32.gmra.mxu0 %v244
    %v268 = vpop.f32.mrf.mxu0
    %v269 = vadd.f32 0.0, %v268
    %270 = vmatmul.f32.gmra.mxu0 %v246
    %v271 = vpop.f32.mrf.mxu0
    %v272 = vadd.f32 0.0, %v271
    %273 = vmatmul.f32.gmra.mxu0 %v248
    %v274 = vpop.f32.mrf.mxu0
    %v275 = vadd.f32 0.0, %v274
    %276 = vmatmul.f32.gmra.mxu0 %v250
    %v277 = vpop.f32.mrf.mxu0
    %v278 = vadd.f32 0.0, %v277
    %279 = vdwg.mxu0
    %v280 = vmul.f32 %v116, %v53
    %v281 = vmul.f32 %v119, %v54
    %v282 = vmul.f32 %v122, %v55
    %v283 = vmul.f32 %v125, %v56
    %v284 = vmul.f32 %v116, %v57
    %v285 = vmul.f32 %v119, %v58
    %v286 = vmul.f32 %v122, %v59
    %v287 = vmul.f32 %v125, %v60
    %v288 = vmul.f32 %v116, %v61
    %v289 = vmul.f32 %v119, %v62
    %v290 = vmul.f32 %v122, %v63
    %v291 = vmul.f32 %v125, %v64
    %v292 = vmul.f32 %v116, %v65
    %v293 = vmul.f32 %v119, %v66
    %v294 = vmul.f32 %v122, %v67
    %v295 = vmul.f32 %v125, %v68
    %296 = vmatpush.msra.mxu0 %v295
    %297 = vmatpush.msra.mxu0 %v294
    %298 = vmatpush.msra.mxu0 %v293
    %299 = vmatpush.msra.mxu0 %v292
    %300 = vmatpush.msra.mxu0 %v291
    %301 = vmatpush.msra.mxu0 %v290
    %302 = vmatpush.msra.mxu0 %v289
    %303 = vmatpush.msra.mxu0 %v288
    %304 = vmatpush.msra.mxu0 %v287
    %305 = vmatpush.msra.mxu0 %v286
    %306 = vmatpush.msra.mxu0 %v285
    %307 = vmatpush.msra.mxu0 %v284
    %308 = vmatpush.msra.mxu0 %v283
    %309 = vmatpush.msra.mxu0 %v282
    %310 = vmatpush.msra.mxu0 %v281
    %311 = vmatpush.msra.mxu0 %v280
    %312 = vmatmul.f32.gmra.mxu0 %v244
    %v313 = vpop.f32.mrf.mxu0
    %v314 = vadd.f32 0.0, %v313
    %315 = vmatmul.f32.gmra.mxu0 %v246
    %v316 = vpop.f32.mrf.mxu0
    %v317 = vadd.f32 0.0, %v316
    %318 = vmatmul.f32.gmra.mxu0 %v248
    %v319 = vpop.f32.mrf.mxu0
    %v320 = vadd.f32 0.0, %v319
    %321 = vmatmul.f32.gmra.mxu0 %v250
    %v322 = vpop.f32.mrf.mxu0
    %v323 = vadd.f32 0.0, %v322
    %324 = vdwg.mxu0
    %v325 = vrcp.pop %v269
    %v326 = vmul.f32 %v269, %v325
    %v327 = vsub.f32 1.0, %v326
    %v328 = vmul.f32 %v325, %v327
    %v329 = vadd.f32 %v325, %v328
    %vm330 = vweird.f32 %v269
    %vm331 = vweird.f32 %v325
    %vm332 = vmor %vm330, %vm331
    %v333 = vsel %vm332, %v325, %v329
    %v334 = vand.u32 2147483647, %v269
    %vm335 = vcmp.eq.f32.partialorder %v334, 8.507059e+37
    %v336 = vand.u32 %v269, 2147483648
    %v337 = vor.u32 1.1754944e-38, %v336
    %v338 = vsel %vm335, %v337, %v333
    %v339 = vmul.f32 %v314, %v338
    %v340 = vrcp.pop %v272
    %v341 = vmul.f32 %v272, %v340
    %v342 = vsub.f32 1.0, %v341
    %v343 = vmul.f32 %v340, %v342
    %v344 = vadd.f32 %v340, %v343
    %vm345 = vweird.f32 %v272
    %vm346 = vweird.f32 %v340
    %vm347 = vmor %vm345, %vm346
    %v348 = vsel %vm347, %v340, %v344
    %v349 = vand.u32 2147483647, %v272
    %vm350 = vcmp.eq.f32.partialorder %v349, 8.507059e+37
    %v351 = vand.u32 %v272, 2147483648
    %v352 = vor.u32 1.1754944e-38, %v351
    %v353 = vsel %vm350, %v352, %v348
    %v354 = vmul.f32 %v317, %v353
    %v355 = vrcp.pop %v275
    %v356 = vmul.f32 %v275, %v355
    %v357 = vsub.f32 1.0, %v356
    %v358 = vmul.f32 %v355, %v357
    %v359 = vadd.f32 %v355, %v358
    %vm360 = vweird.f32 %v275
    %vm361 = vweird.f32 %v355
    %vm362 = vmor %vm360, %vm361
    %v363 = vsel %vm362, %v355, %v359
    %v364 = vand.u32 2147483647, %v275
    %vm365 = vcmp.eq.f32.partialorder %v364, 8.507059e+37
    %v366 = vand.u32 %v275, 2147483648
    %v367 = vor.u32 1.1754944e-38, %v366
    %v368 = vsel %vm365, %v367, %v363
    %v369 = vmul.f32 %v320, %v368
    %v370 = vrcp.pop %v278
    %v371 = vmul.f32 %v278, %v370
    %v372 = vsub.f32 1.0, %v371
    %v373 = vmul.f32 %v370, %v372
    %v374 = vadd.f32 %v370, %v373
    %vm375 = vweird.f32 %v278
    %vm376 = vweird.f32 %v370
    %vm377 = vmor %vm375, %vm376
    %v378 = vsel %vm377, %v370, %v374
    %v379 = vand.u32 2147483647, %v278
    %vm380 = vcmp.eq.f32.partialorder %v379, 8.507059e+37
    %v381 = vand.u32 %v278, 2147483648
    %v382 = vor.u32 1.1754944e-38, %v381
    %v383 = vsel %vm380, %v382, %v378
    %v384 = vmul.f32 %v323, %v383
    %v385 = vadd.f32 %v339, %v52
    %v386 = vadd.f32 %v354, %v52
    %v387 = vadd.f32 %v369, %v52
    %v388 = vadd.f32 %v384, %v52
    %v389 = vmax.f32 %v385, 0.0
    %v390 = vmax.f32 %v386, 0.0
    %v391 = vmax.f32 %v387, 0.0
    %v392 = vmax.f32 %v388, 0.0
    %v393 = vld [vmem:[#allocation4 + $0x430] sm:$0xff]
    %v394 = vld [vmem:[#allocation4 + $0x440] sm:$0xff]
    %v395 = vld [vmem:[#allocation4 + $0x450] sm:$0xff]
    %v396 = vld [vmem:[#allocation4 + $0x460] sm:$0xff]
    %v397 = vld [vmem:[#allocation4 + $0x470] ss:$0 sm:$0xff]
    %v398 = vld [vmem:[#allocation2 + $0x80] sm:$0xff]
    %v399 = vld [vmem:[#allocation2 + $0x88] sm:$0xff]
    %v400 = vld [vmem:[#allocation2 + $0xa0] sm:$0xff]
    %v401 = vld [vmem:[#allocation2 + $0xa8] sm:$0xff]
    %v402 = vld [vmem:[#allocation2 + $0xc0] sm:$0xff]
    %v403 = vld [vmem:[#allocation2 + $0xc8] sm:$0xff]
    %v404 = vld [vmem:[#allocation2 + $0xe0] sm:$0xff]
    %v405 = vld [vmem:[#allocation2 + $0xe8] sm:$0xff]
    %v407 = vsel %vm127, %v389, 0
    %v410 = vsel %vm127, %v390, 0
    %v413 = vsel %vm127, %v391, 0
    %v416 = vsel %vm127, %v392, 0
    %418 = vmatpush.msra.mxu0 0.0
    %419 = vmatpush.msra.mxu0 0.0
    %420 = vmatpush.msra.mxu0 0.0
    %421 = vmatpush.msra.mxu0 0.0
    %422 = vmatpush.msra.mxu0 0.0
    %423 = vmatpush.msra.mxu0 0.0
    %424 = vmatpush.msra.mxu0 0.0
    %425 = vmatpush.msra.mxu0 0.0
    %426 = vmatpush.msra.mxu0 0.0
    %427 = vmatpush.msra.mxu0 0.0
    %428 = vmatpush.msra.mxu0 0.0
    %429 = vmatpush.msra.mxu0 0.0
    %430 = vmatpush.msra.mxu0 %v396
    %431 = vmatpush.msra.mxu0 %v395
    %432 = vmatpush.msra.mxu0 %v394
    %433 = vmatpush.msra.mxu0 %v393
    %434 = vmatmul.f32.gmra.mxu0 %v407
    %v435 = vpop.f32.mrf.mxu0
    %v436 = vadd.f32 0.0, %v435
    %437 = vmatmul.f32.gmra.mxu0 %v410
    %v438 = vpop.f32.mrf.mxu0
    %v439 = vadd.f32 0.0, %v438
    %440 = vmatmul.f32.gmra.mxu0 %v413
    %v441 = vpop.f32.mrf.mxu0
    %v442 = vadd.f32 0.0, %v441
    %443 = vmatmul.f32.gmra.mxu0 %v416
    %v444 = vpop.f32.mrf.mxu0
    %v445 = vadd.f32 0.0, %v444
    %446 = vdwg.mxu0
    %v448 = vsel %vm127, %v436, 0
    %v451 = vsel %vm127, %v439, 0
    %v454 = vsel %vm127, %v442, 0
    %v457 = vsel %vm127, %v445, 0
    %459 = vmatpush.msra.mxu0 0.0
    %460 = vmatpush.msra.mxu0 0.0
    %461 = vmatpush.msra.mxu0 0.0
    %462 = vmatpush.msra.mxu0 0.0
    %463 = vmatpush.msra.mxu0 0.0
    %464 = vmatpush.msra.mxu0 0.0
    %465 = vmatpush.msra.mxu0 0.0
    %466 = vmatpush.msra.mxu0 0.0
    %467 = vmatpush.msra.mxu0 0.0
    %468 = vmatpush.msra.mxu0 0.0
    %469 = vmatpush.msra.mxu0 0.0
    %470 = vmatpush.msra.mxu0 0.0
    %471 = vmatpush.msra.mxu0 %v404
    %472 = vmatpush.msra.mxu0 %v402
    %473 = vmatpush.msra.mxu0 %v400
    %474 = vmatpush.msra.mxu0 %v398
    %475 = vmatmul.f32.gmra.mxu0 %v448
    %v476 = vpop.f32.mrf.mxu0
    %v477 = vadd.f32 0.0, %v476
    %478 = vmatmul.f32.gmra.mxu0 %v451
    %v479 = vpop.f32.mrf.mxu0
    %v480 = vadd.f32 0.0, %v479
    %481 = vmatmul.f32.gmra.mxu0 %v454
    %v482 = vpop.f32.mrf.mxu0
    %v483 = vadd.f32 0.0, %v482
    %484 = vmatmul.f32.gmra.mxu0 %v457
    %v485 = vpop.f32.mrf.mxu0
    %v486 = vadd.f32 0.0, %v485
    %487 = vdwg.mxu0
    %488 = vmatpush.msra.mxu0 0.0
    %489 = vmatpush.msra.mxu0 0.0
    %490 = vmatpush.msra.mxu0 0.0
    %491 = vmatpush.msra.mxu0 0.0
    %492 = vmatpush.msra.mxu0 0.0
    %493 = vmatpush.msra.mxu0 0.0
    %494 = vmatpush.msra.mxu0 0.0
    %495 = vmatpush.msra.mxu0 0.0
    %496 = vmatpush.msra.mxu0 0.0
    %497 = vmatpush.msra.mxu0 0.0
    %498 = vmatpush.msra.mxu0 0.0
    %499 = vmatpush.msra.mxu0 0.0
    %500 = vmatpush.msra.mxu0 %v405
    %501 = vmatpush.msra.mxu0 %v403
    %502 = vmatpush.msra.mxu0 %v401
    %503 = vmatpush.msra.mxu0 %v399
    %504 = vmatmul.f32.gmra.mxu0 %v448
    %v505 = vpop.f32.mrf.mxu0
    %v506 = vadd.f32 0.0, %v505
    %507 = vmatmul.f32.gmra.mxu0 %v451
    %v508 = vpop.f32.mrf.mxu0
    %v509 = vadd.f32 0.0, %v508
    %510 = vmatmul.f32.gmra.mxu0 %v454
    %v511 = vpop.f32.mrf.mxu0
    %v512 = vadd.f32 0.0, %v511
    %513 = vmatmul.f32.gmra.mxu0 %v457
    %v514 = vpop.f32.mrf.mxu0
    %v515 = vadd.f32 0.0, %v514
    %516 = vdwg.mxu0
    %v517 = vmul.f32 %v506, %v69
    %v518 = vmul.f32 %v509, %v70
    %v519 = vmul.f32 %v512, %v71
    %v520 = vmul.f32 %v515, %v72
    %v521 = vadd.f32 %v517, %v518
    %v522 = vadd.f32 %v521, %v519
    %v523 = vadd.f32 %v522, %v520
    %v524 = vrot.slane %v523, 4
    %v525 = vadd.f32 %v523, %v524
    %v526 = vrot.slane %v525, 2
    %v527 = vadd.f32 %v525, %v526
    %v528 = vrot.slane %v527, 1
    %v529 = vadd.f32 %v527, %v528
    %v530 = vadd.f32 %v477, %v529
    %v531 = vadd.f32 %v480, %v529
    %v532 = vadd.f32 %v483, %v529
    %v533 = vadd.f32 %v486, %v529
    %vm534 = vcmp.gt.f32.partialorder %v530, 0.0
    %vm535 = vcmp.gt.f32.partialorder %v531, 0.0
    %vm536 = vcmp.gt.f32.partialorder %v532, 0.0
    %vm537 = vcmp.gt.f32.partialorder %v533, 0.0
    %v538 = vmul.f32 %v530, 0.2
    %v539 = vmul.f32 %v531, 0.2
    %v540 = vmul.f32 %v532, 0.2
    %v541 = vmul.f32 %v533, 0.2
    %v542 = vsel %vm534, %v530, %v538
    %v543 = vsel %vm535, %v531, %v539
    %v544 = vsel %vm536, %v532, %v540
    %v545 = vsel %vm537, %v533, %v541
    %v546 = vadd.f32 %v542, %v73
    %v547 = vadd.f32 %v543, %v74
    %v548 = vadd.f32 %v544, %v75
    %v549 = vadd.f32 %v545, %v76
    %550 = vmax.xlane.f32.xlu0 %v546
    %v551 = vpop.xlane.xlu0 %550
    %552 = vmax.xlane.f32.xlu0 %v547
    %v553 = vpop.xlane.xlu0 %552
    %554 = vmax.xlane.f32.xlu0 %v548
    %v555 = vpop.xlane.xlu0 %554
    %556 = vmax.xlane.f32.xlu0 %v549
    %v557 = vpop.xlane.xlu0 %556
    %v558 = vsub.f32 %v546, %v551
    %v559 = vsub.f32 %v547, %v553
    %v560 = vsub.f32 %v548, %v555
    %v561 = vsub.f32 %v549, %v557
    %v562 = vmul.f32 %v558, 1.442695
    %v563 = vpow.pop %v562
    %v564 = vmul.f32 %v559, 1.442695
    %v565 = vpow.pop %v564
    %v566 = vmul.f32 %v560, 1.442695
    %v567 = vpow.pop %v566
    %v568 = vmul.f32 %v561, 1.442695
    %v569 = vpow.pop %v568
    %570 = vmatpush.msra.mxu0 %v68
    %571 = vmatpush.msra.mxu0 %v67
    %572 = vmatpush.msra.mxu0 %v66
    %573 = vmatpush.msra.mxu0 %v65
    %574 = vmatpush.msra.mxu0 %v64
    %575 = vmatpush.msra.mxu0 %v63
    %576 = vmatpush.msra.mxu0 %v62
    %577 = vmatpush.msra.mxu0 %v61
    %578 = vmatpush.msra.mxu0 %v60
    %579 = vmatpush.msra.mxu0 %v59
    %580 = vmatpush.msra.mxu0 %v58
    %581 = vmatpush.msra.mxu0 %v57
    %582 = vmatpush.msra.mxu0 %v56
    %583 = vmatpush.msra.mxu0 %v55
    %584 = vmatpush.msra.mxu0 %v54
    %585 = vmatpush.msra.mxu0 %v53
    %586 = vmatmul.f32.gmra.mxu0 %v563
    %v587 = vpop.f32.mrf.mxu0
    %v588 = vadd.f32 0.0, %v587
    %589 = vmatmul.f32.gmra.mxu0 %v565
    %v590 = vpop.f32.mrf.mxu0
    %v591 = vadd.f32 0.0, %v590
    %592 = vmatmul.f32.gmra.mxu0 %v567
    %v593 = vpop.f32.mrf.mxu0
    %v594 = vadd.f32 0.0, %v593
    %595 = vmatmul.f32.gmra.mxu0 %v569
    %v596 = vpop.f32.mrf.mxu0
    %v597 = vadd.f32 0.0, %v596
    %598 = vdwg.mxu0
    %v599 = vmul.f32 %v436, %v53
    %v600 = vmul.f32 %v439, %v54
    %v601 = vmul.f32 %v442, %v55
    %v602 = vmul.f32 %v445, %v56
    %v603 = vmul.f32 %v436, %v57
    %v604 = vmul.f32 %v439, %v58
    %v605 = vmul.f32 %v442, %v59
    %v606 = vmul.f32 %v445, %v60
    %v607 = vmul.f32 %v436, %v61
    %v608 = vmul.f32 %v439, %v62
    %v609 = vmul.f32 %v442, %v63
    %v610 = vmul.f32 %v445, %v64
    %v611 = vmul.f32 %v436, %v65
    %v612 = vmul.f32 %v439, %v66
    %v613 = vmul.f32 %v442, %v67
    %v614 = vmul.f32 %v445, %v68
    %615 = vmatpush.msra.mxu0 %v614
    %616 = vmatpush.msra.mxu0 %v613
    %617 = vmatpush.msra.mxu0 %v612
    %618 = vmatpush.msra.mxu0 %v611
    %619 = vmatpush.msra.mxu0 %v610
    %620 = vmatpush.msra.mxu0 %v609
    %621 = vmatpush.msra.mxu0 %v608
    %622 = vmatpush.msra.mxu0 %v607
    %623 = vmatpush.msra.mxu0 %v606
    %624 = vmatpush.msra.mxu0 %v605
    %625 = vmatpush.msra.mxu0 %v604
    %626 = vmatpush.msra.mxu0 %v603
    %627 = vmatpush.msra.mxu0 %v602
    %628 = vmatpush.msra.mxu0 %v601
    %629 = vmatpush.msra.mxu0 %v600
    %630 = vmatpush.msra.mxu0 %v599
    %631 = vmatmul.f32.gmra.mxu0 %v563
    %v632 = vpop.f32.mrf.mxu0
    %v633 = vadd.f32 0.0, %v632
    %634 = vmatmul.f32.gmra.mxu0 %v565
    %v635 = vpop.f32.mrf.mxu0
    %v636 = vadd.f32 0.0, %v635
    %637 = vmatmul.f32.gmra.mxu0 %v567
    %v638 = vpop.f32.mrf.mxu0
    %v639 = vadd.f32 0.0, %v638
    %640 = vmatmul.f32.gmra.mxu0 %v569
    %v641 = vpop.f32.mrf.mxu0
    %v642 = vadd.f32 0.0, %v641
    %643 = vdwg.mxu0
    %v644 = vrcp.pop %v588
    %v645 = vmul.f32 %v588, %v644
    %v646 = vsub.f32 1.0, %v645
    %v647 = vmul.f32 %v644, %v646
    %v648 = vadd.f32 %v644, %v647
    %vm649 = vweird.f32 %v588
    %vm650 = vweird.f32 %v644
    %vm651 = vmor %vm649, %vm650
    %v652 = vsel %vm651, %v644, %v648
    %v653 = vand.u32 2147483647, %v588
    %vm654 = vcmp.eq.f32.partialorder %v653, 8.507059e+37
    %v655 = vand.u32 %v588, 2147483648
    %v656 = vor.u32 1.1754944e-38, %v655
    %v657 = vsel %vm654, %v656, %v652
    %v658 = vmul.f32 %v633, %v657
    %v659 = vrcp.pop %v591
    %v660 = vmul.f32 %v591, %v659
    %v661 = vsub.f32 1.0, %v660
    %v662 = vmul.f32 %v659, %v661
    %v663 = vadd.f32 %v659, %v662
    %vm664 = vweird.f32 %v591
    %vm665 = vweird.f32 %v659
    %vm666 = vmor %vm664, %vm665
    %v667 = vsel %vm666, %v659, %v663
    %v668 = vand.u32 2147483647, %v591
    %vm669 = vcmp.eq.f32.partialorder %v668, 8.507059e+37
    %v670 = vand.u32 %v591, 2147483648
    %v671 = vor.u32 1.1754944e-38, %v670
    %v672 = vsel %vm669, %v671, %v667
    %v673 = vmul.f32 %v636, %v672
    %v674 = vrcp.pop %v594
    %v675 = vmul.f32 %v594, %v674
    %v676 = vsub.f32 1.0, %v675
    %v677 = vmul.f32 %v674, %v676
    %v678 = vadd.f32 %v674, %v677
    %vm679 = vweird.f32 %v594
    %vm680 = vweird.f32 %v674
    %vm681 = vmor %vm679, %vm680
    %v682 = vsel %vm681, %v674, %v678
    %v683 = vand.u32 2147483647, %v594
    %vm684 = vcmp.eq.f32.partialorder %v683, 8.507059e+37
    %v685 = vand.u32 %v594, 2147483648
    %v686 = vor.u32 1.1754944e-38, %v685
    %v687 = vsel %vm684, %v686, %v682
    %v688 = vmul.f32 %v639, %v687
    %v689 = vrcp.pop %v597
    %v690 = vmul.f32 %v597, %v689
    %v691 = vsub.f32 1.0, %v690
    %v692 = vmul.f32 %v689, %v691
    %v693 = vadd.f32 %v689, %v692
    %vm694 = vweird.f32 %v597
    %vm695 = vweird.f32 %v689
    %vm696 = vmor %vm694, %vm695
    %v697 = vsel %vm696, %v689, %v693
    %v698 = vand.u32 2147483647, %v597
    %vm699 = vcmp.eq.f32.partialorder %v698, 8.507059e+37
    %v700 = vand.u32 %v597, 2147483648
    %v701 = vor.u32 1.1754944e-38, %v700
    %v702 = vsel %vm699, %v701, %v697
    %v703 = vmul.f32 %v642, %v702
    %v704 = vadd.f32 %v658, %v397
    %v705 = vadd.f32 %v673, %v397
    %v706 = vadd.f32 %v688, %v397
    %v707 = vadd.f32 %v703, %v397
    %v708 = vld [vmem:[#allocation4 + $0x480] sm:$0xff]
    %v709 = vld [vmem:[#allocation4 + $0x490] sm:$0xff]
    %v710 = vld [vmem:[#allocation4 + $0x4a0] sm:$0xff]
    %v711 = vld [vmem:[#allocation4 + $0x4b0] sm:$0xff]
    %v712 = vld [vmem:[#allocation4 + $0x4c0] ss:$0 sm:$0xff]
    %v713 = vld [vmem:[#allocation4 + $0x180] sm:$0xff]
    %v714 = vld [vmem:[#allocation4 + $0x190] sm:$0xff]
    %v715 = vld [vmem:[#allocation4 + $0x1a0] sm:$0xff]
    %v716 = vld [vmem:[#allocation4 + $0x1b0] sm:$0xff]
    %v717 = vld [vmem:[#allocation4 + $0x1c0] sm:$0xff]
    %v718 = vld [vmem:[#allocation4 + $0x1d0] sm:$0xff]
    %v719 = vld [vmem:[#allocation4 + $0x1e0] sm:$0xff]
    %v720 = vld [vmem:[#allocation4 + $0x1f0] sm:$0xff]
    %v721 = vld [vmem:[#allocation4 + $0x200] sm:$0xff]
    %v722 = vld [vmem:[#allocation4 + $0x210] sm:$0xff]
    %v723 = vld [vmem:[#allocation4 + $0x220] sm:$0xff]
    %v724 = vld [vmem:[#allocation4 + $0x230] sm:$0xff]
    %v725 = vld [vmem:[#allocation4 + $0x240] sm:$0xff]
    %v726 = vld [vmem:[#allocation4 + $0x250] sm:$0xff]
    %v727 = vld [vmem:[#allocation4 + $0x260] sm:$0xff]
    %v728 = vld [vmem:[#allocation4 + $0x270] sm:$0xff]
    %v729 = vld [vmem:[#allocation4 + $0x280] sm:$0xff]
    %v730 = vld [vmem:[#allocation4 + $0x290] sm:$0xff]
    %v731 = vld [vmem:[#allocation4 + $0x2a0] sm:$0xff]
    %v732 = vld [vmem:[#allocation4 + $0x2b0] sm:$0xff]
    %v733 = vld [vmem:[#allocation4 + $0x2c0] sm:$0xff]
    %v734 = vld [vmem:[#allocation4 + $0x2d0] sm:$0xff]
    %v735 = vld [vmem:[#allocation4 + $0x2e0] sm:$0xff]
    %v736 = vld [vmem:[#allocation4 + $0x2f0] sm:$0xff]
    %v737 = vld [vmem:[#allocation4 + $0x300] sm:$0xff]
    %v738 = vld [vmem:[#allocation4 + $0x310] sm:$0xff]
    %v739 = vld [vmem:[#allocation4 + $0x320] sm:$0xff]
    %v740 = vld [vmem:[#allocation4 + $0x330] sm:$0xff]
    %v741 = vld [vmem:[#allocation4 + $0x340] sm:$0xff]
    %v742 = vld [vmem:[#allocation4 + $0x350] sm:$0xff]
    %v743 = vld [vmem:[#allocation4 + $0x360] sm:$0xff]
    %v744 = vld [vmem:[#allocation4 + $0x370] sm:$0xff]
    %v745 = vld [vmem:[#allocation4 + $0x380] sm:$0xff]
    %v746 = vld [vmem:[#allocation4 + $0x388] sm:$0xff]
    %v747 = vld [vmem:[#allocation4 + $0x390] sm:$0xff]
    %v748 = vld [vmem:[#allocation4 + $0x398] sm:$0xff]
    %v749 = vld [vmem:[#allocation4 + $0x3a0] sm:$0xff]
    %v750 = vld [vmem:[#allocation4 + $0x3a8] sm:$0xff]
    %v751 = vld [vmem:[#allocation4 + $0x3b0] sm:$0xff]
    %v752 = vld [vmem:[#allocation4 + $0x3b8] sm:$0xff]
    %v753 = vld [vmem:[#allocation4 + $0x3c0] sm:$0xff]
    %v754 = vld [vmem:[#allocation4 + $0x3c8] sm:$0xff]
    %v755 = vld [vmem:[#allocation4 + $0x3d0] sm:$0xff]
    %v756 = vld [vmem:[#allocation4 + $0x3d8] sm:$0xff]
    %v757 = vld [vmem:[#allocation4 + $0x3e0] sm:$0xff]
    %v758 = vld [vmem:[#allocation4 + $0x3e8] sm:$0xff]
    %v759 = vld [vmem:[#allocation4 + $0x3f0] sm:$0xff]
    %v760 = vld [vmem:[#allocation4 + $0x3f8] sm:$0xff]
    %v761 = vld [vmem:[#allocation2 + $0x100] sm:$0xff]
    %v762 = vld [vmem:[#allocation2 + $0x108] sm:$0xff]
    %v763 = vld [vmem:[#allocation2 + $0x110] sm:$0xff]
    %v764 = vld [vmem:[#allocation2 + $0x118] sm:$0xff]
    %v765 = vld [vmem:[#allocation2 + $0x120] sm:$0xff]
    %v766 = vld [vmem:[#allocation2 + $0x128] sm:$0xff]
    %v767 = vld [vmem:[#allocation2 + $0x130] sm:$0xff]
    %v768 = vld [vmem:[#allocation2 + $0x138] sm:$0xff]
    %v769 = vld [vmem:[#allocation2 + $0x140] sm:$0xff]
    %v770 = vld [vmem:[#allocation2 + $0x148] sm:$0xff]
    %v771 = vld [vmem:[#allocation2 + $0x150] sm:$0xff]
    %v772 = vld [vmem:[#allocation2 + $0x158] sm:$0xff]
    %v773 = vld [vmem:[#allocation2 + $0x160] sm:$0xff]
    %v774 = vld [vmem:[#allocation2 + $0x168] sm:$0xff]
    %v775 = vld [vmem:[#allocation2 + $0x170] sm:$0xff]
    %v776 = vld [vmem:[#allocation2 + $0x178] sm:$0xff]
    %v777 = vld [vmem:[#allocation2 + $0x180] sm:$0xff]
    %v778 = vld [vmem:[#allocation2 + $0x188] sm:$0xff]
    %v779 = vld [vmem:[#allocation2 + $0x190] sm:$0xff]
    %v780 = vld [vmem:[#allocation2 + $0x198] sm:$0xff]
    %v781 = vld [vmem:[#allocation2 + $0x1a0] sm:$0xff]
    %v782 = vld [vmem:[#allocation2 + $0x1a8] sm:$0xff]
    %v783 = vld [vmem:[#allocation2 + $0x1b0] sm:$0xff]
    %v784 = vld [vmem:[#allocation2 + $0x1b8] sm:$0xff]
    %v786 = vsel %vm127, %v704, 0
    %v789 = vsel %vm127, %v705, 0
    %v792 = vsel %vm127, %v706, 0
    %v795 = vsel %vm127, %v707, 0
    %797 = vmatpush.msra.mxu0 0.0
    %798 = vmatpush.msra.mxu0 0.0
    %799 = vmatpush.msra.mxu0 0.0
    %800 = vmatpush.msra.mxu0 0.0
    %801 = vmatpush.msra.mxu0 0.0
    %802 = vmatpush.msra.mxu0 0.0
    %803 = vmatpush.msra.mxu0 0.0
    %804 = vmatpush.msra.mxu0 0.0
    %805 = vmatpush.msra.mxu0 0.0
    %806 = vmatpush.msra.mxu0 0.0
    %807 = vmatpush.msra.mxu0 0.0
    %808 = vmatpush.msra.mxu0 0.0
    %809 = vmatpush.msra.mxu0 %v711
    %810 = vmatpush.msra.mxu0 %v710
    %811 = vmatpush.msra.mxu0 %v709
    %812 = vmatpush.msra.mxu0 %v708
    %813 = vmatmul.f32.gmra.mxu0 %v786
    %v814 = vpop.f32.mrf.mxu0
    %v815 = vadd.f32 0.0, %v814
    %816 = vmatmul.f32.gmra.mxu0 %v789
    %v817 = vpop.f32.mrf.mxu0
    %v818 = vadd.f32 0.0, %v817
    %819 = vmatmul.f32.gmra.mxu0 %v792
    %v820 = vpop.f32.mrf.mxu0
    %v821 = vadd.f32 0.0, %v820
    %822 = vmatmul.f32.gmra.mxu0 %v795
    %v823 = vpop.f32.mrf.mxu0
    %v824 = vadd.f32 0.0, %v823
    %825 = vdwg.mxu0
    %vm826 = vcmask 392192
    %v828 = vsel %vm826, %v815, 0
    %v831 = vsel %vm826, %v818, 0
    %v834 = vsel %vm826, %v821, 0
    %v837 = vsel %vm826, %v824, 0
    %839 = vmatpush.msra.mxu0 0.0
    %840 = vmatpush.msra.mxu0 0.0
    %841 = vmatpush.msra.mxu0 0.0
    %842 = vmatpush.msra.mxu0 0.0
    %843 = vmatpush.msra.mxu0 0.0
    %844 = vmatpush.msra.mxu0 0.0
    %845 = vmatpush.msra.mxu0 0.0
    %846 = vmatpush.msra.mxu0 0.0
    %847 = vmatpush.msra.mxu0 0.0
    %848 = vmatpush.msra.mxu0 0.0
    %849 = vmatpush.msra.mxu0 %v781
    %850 = vmatpush.msra.mxu0 %v777
    %851 = vmatpush.msra.mxu0 %v773
    %852 = vmatpush.msra.mxu0 %v769
    %853 = vmatpush.msra.mxu0 %v765
    %854 = vmatpush.msra.mxu0 %v761
    %855 = vmatmul.f32.gmra.mxu0 %v828
    %v856 = vpop.f32.mrf.mxu0
    %v857 = vadd.f32 0.0, %v856
    %858 = vmatmul.f32.gmra.mxu0 %v831
    %v859 = vpop.f32.mrf.mxu0
    %v860 = vadd.f32 0.0, %v859
    %861 = vmatmul.f32.gmra.mxu0 %v834
    %v862 = vpop.f32.mrf.mxu0
    %v863 = vadd.f32 0.0, %v862
    %864 = vmatmul.f32.gmra.mxu0 %v837
    %v865 = vpop.f32.mrf.mxu0
    %v866 = vadd.f32 0.0, %v865
    %867 = vdwg.mxu0
    %868 = vmatpush.msra.mxu0 0.0
    %869 = vmatpush.msra.mxu0 0.0
    %870 = vmatpush.msra.mxu0 0.0
    %871 = vmatpush.msra.mxu0 0.0
    %872 = vmatpush.msra.mxu0 0.0
    %873 = vmatpush.msra.mxu0 0.0
    %874 = vmatpush.msra.mxu0 0.0
    %875 = vmatpush.msra.mxu0 0.0
    %876 = vmatpush.msra.mxu0 0.0
    %877 = vmatpush.msra.mxu0 0.0
    %878 = vmatpush.msra.mxu0 %v782
    %879 = vmatpush.msra.mxu0 %v778
    %880 = vmatpush.msra.mxu0 %v774
    %881 = vmatpush.msra.mxu0 %v770
    %882 = vmatpush.msra.mxu0 %v766
    %883 = vmatpush.msra.mxu0 %v762
    %884 = vmatmul.f32.gmra.mxu0 %v828
    %v885 = vpop.f32.mrf.mxu0
    %v886 = vadd.f32 0.0, %v885
    %887 = vmatmul.f32.gmra.mxu0 %v831
    %v888 = vpop.f32.mrf.mxu0
    %v889 = vadd.f32 0.0, %v888
    %890 = vmatmul.f32.gmra.mxu0 %v834
    %v891 = vpop.f32.mrf.mxu0
    %v892 = vadd.f32 0.0, %v891
    %893 = vmatmul.f32.gmra.mxu0 %v837
    %v894 = vpop.f32.mrf.mxu0
    %v895 = vadd.f32 0.0, %v894
    %896 = vdwg.mxu0
    %897 = vmatpush.msra.mxu0 0.0
    %898 = vmatpush.msra.mxu0 0.0
    %899 = vmatpush.msra.mxu0 0.0
    %900 = vmatpush.msra.mxu0 0.0
    %901 = vmatpush.msra.mxu0 0.0
    %902 = vmatpush.msra.mxu0 0.0
    %903 = vmatpush.msra.mxu0 0.0
    %904 = vmatpush.msra.mxu0 0.0
    %905 = vmatpush.msra.mxu0 0.0
    %906 = vmatpush.msra.mxu0 0.0
    %907 = vmatpush.msra.mxu0 %v783
    %908 = vmatpush.msra.mxu0 %v779
    %909 = vmatpush.msra.mxu0 %v775
    %910 = vmatpush.msra.mxu0 %v771
    %911 = vmatpush.msra.mxu0 %v767
    %912 = vmatpush.msra.mxu0 %v763
    %913 = vmatmul.f32.gmra.mxu0 %v828
    %v914 = vpop.f32.mrf.mxu0
    %v915 = vadd.f32 0.0, %v914
    %916 = vmatmul.f32.gmra.mxu0 %v831
    %v917 = vpop.f32.mrf.mxu0
    %v918 = vadd.f32 0.0, %v917
    %919 = vmatmul.f32.gmra.mxu0 %v834
    %v920 = vpop.f32.mrf.mxu0
    %v921 = vadd.f32 0.0, %v920
    %922 = vmatmul.f32.gmra.mxu0 %v837
    %v923 = vpop.f32.mrf.mxu0
    %v924 = vadd.f32 0.0, %v923
    %925 = vdwg.mxu0
    %926 = vmatpush.msra.mxu0 0.0
    %927 = vmatpush.msra.mxu0 0.0
    %928 = vmatpush.msra.mxu0 0.0
    %929 = vmatpush.msra.mxu0 0.0
    %930 = vmatpush.msra.mxu0 0.0
    %931 = vmatpush.msra.mxu0 0.0
    %932 = vmatpush.msra.mxu0 0.0
    %933 = vmatpush.msra.mxu0 0.0
    %934 = vmatpush.msra.mxu0 0.0
    %935 = vmatpush.msra.mxu0 0.0
    %936 = vmatpush.msra.mxu0 %v784
    %937 = vmatpush.msra.mxu0 %v780
    %938 = vmatpush.msra.mxu0 %v776
    %939 = vmatpush.msra.mxu0 %v772
    %940 = vmatpush.msra.mxu0 %v768
    %941 = vmatpush.msra.mxu0 %v764
    %942 = vmatmul.f32.gmra.mxu0 %v828
    %v943 = vpop.f32.mrf.mxu0
    %v944 = vadd.f32 0.0, %v943
    %945 = vmatmul.f32.gmra.mxu0 %v831
    %v946 = vpop.f32.mrf.mxu0
    %v947 = vadd.f32 0.0, %v946
    %948 = vmatmul.f32.gmra.mxu0 %v834
    %v949 = vpop.f32.mrf.mxu0
    %v950 = vadd.f32 0.0, %v949
    %951 = vmatmul.f32.gmra.mxu0 %v837
    %v952 = vpop.f32.mrf.mxu0
    %v953 = vadd.f32 0.0, %v952
    %954 = vdwg.mxu0
    %v955 = vmul.f32 %v915, %v745
    %v956 = vmul.f32 %v944, %v746
    %v957 = vmul.f32 %v918, %v747
    %v958 = vmul.f32 %v947, %v748
    %v959 = vmul.f32 %v921, %v749
    %v960 = vmul.f32 %v950, %v750
    %v961 = vmul.f32 %v924, %v751
    %v962 = vmul.f32 %v953, %v752
    %v963 = vadd.f32 %v955, %v957
    %v964 = vadd.f32 %v963, %v959
    %v965 = vadd.f32 %v964, %v961
    %v966 = vrot.slane %v965, 4
    %v967 = vadd.f32 %v965, %v966
    %v968 = vrot.slane %v967, 2
    %v969 = vadd.f32 %v967, %v968
    %v970 = vrot.slane %v969, 1
    %v971 = vadd.f32 %v969, %v970
    %v972 = vadd.f32 %v956, %v958
    %v973 = vadd.f32 %v972, %v960
    %v974 = vadd.f32 %v973, %v962
    %v975 = vrot.slane %v974, 4
    %v976 = vadd.f32 %v974, %v975
    %v977 = vrot.slane %v976, 2
    %v978 = vadd.f32 %v976, %v977
    %v979 = vrot.slane %v978, 1
    %v980 = vadd.f32 %v978, %v979
    %v981 = vadd.f32 %v857, %v971
    %v982 = vadd.f32 %v886, %v980
    %v983 = vadd.f32 %v860, %v971
    %v984 = vadd.f32 %v889, %v980
    %v985 = vadd.f32 %v863, %v971
    %v986 = vadd.f32 %v892, %v980
    %v987 = vadd.f32 %v866, %v971
    %v988 = vadd.f32 %v895, %v980
    %vm989 = vcmp.gt.f32.partialorder %v981, 0.0
    %vm990 = vcmp.gt.f32.partialorder %v982, 0.0
    %vm991 = vcmp.gt.f32.partialorder %v983, 0.0
    %vm992 = vcmp.gt.f32.partialorder %v984, 0.0
    %vm993 = vcmp.gt.f32.partialorder %v985, 0.0
    %vm994 = vcmp.gt.f32.partialorder %v986, 0.0
    %vm995 = vcmp.gt.f32.partialorder %v987, 0.0
    %vm996 = vcmp.gt.f32.partialorder %v988, 0.0
    %v997 = vmul.f32 %v981, 0.2
    %v998 = vmul.f32 %v982, 0.2
    %v999 = vmul.f32 %v983, 0.2
    %v1000 = vmul.f32 %v984, 0.2
    %v1001 = vmul.f32 %v985, 0.2
    %v1002 = vmul.f32 %v986, 0.2
    %v1003 = vmul.f32 %v987, 0.2
    %v1004 = vmul.f32 %v988, 0.2
    %v1005 = vsel %vm989, %v981, %v997
    %v1006 = vsel %vm990, %v982, %v998
    %v1007 = vsel %vm991, %v983, %v999
    %v1008 = vsel %vm992, %v984, %v1000
    %v1009 = vsel %vm993, %v985, %v1001
    %v1010 = vsel %vm994, %v986, %v1002
    %v1011 = vsel %vm995, %v987, %v1003
    %v1012 = vsel %vm996, %v988, %v1004
    %v1013 = vadd.f32 %v1005, %v753
    %v1014 = vadd.f32 %v1006, %v754
    %v1015 = vadd.f32 %v1007, %v755
    %v1016 = vadd.f32 %v1008, %v756
    %v1017 = vadd.f32 %v1009, %v757
    %v1018 = vadd.f32 %v1010, %v758
    %v1019 = vadd.f32 %v1011, %v759
    %v1020 = vadd.f32 %v1012, %v760
    %v1021 = vmax.f32 %v1013, %v1014
    %1022 = vmax.xlane.f32.xlu0 %v1021
    %v1023 = vpop.xlane.xlu0 %1022
    %v1024 = vmax.f32 %v1015, %v1016
    %1025 = vmax.xlane.f32.xlu0 %v1024
    %v1026 = vpop.xlane.xlu0 %1025
    %v1027 = vmax.f32 %v1017, %v1018
    %1028 = vmax.xlane.f32.xlu0 %v1027
    %v1029 = vpop.xlane.xlu0 %1028
    %v1030 = vmax.f32 %v1019, %v1020
    %1031 = vmax.xlane.f32.xlu0 %v1030
    %v1032 = vpop.xlane.xlu0 %1031
    %v1033 = vsub.f32 %v1013, %v1023
    %v1034 = vsub.f32 %v1014, %v1023
    %v1035 = vsub.f32 %v1015, %v1026
    %v1036 = vsub.f32 %v1016, %v1026
    %v1037 = vsub.f32 %v1017, %v1029
    %v1038 = vsub.f32 %v1018, %v1029
    %v1039 = vsub.f32 %v1019, %v1032
    %v1040 = vsub.f32 %v1020, %v1032
    %v1041 = vmul.f32 %v1033, 1.442695
    %v1042 = vpow.pop %v1041
    %v1043 = vmul.f32 %v1034, 1.442695
    %v1044 = vpow.pop %v1043
    %v1045 = vmul.f32 %v1035, 1.442695
    %v1046 = vpow.pop %v1045
    %v1047 = vmul.f32 %v1036, 1.442695
    %v1048 = vpow.pop %v1047
    %v1049 = vmul.f32 %v1037, 1.442695
    %v1050 = vpow.pop %v1049
    %v1051 = vmul.f32 %v1038, 1.442695
    %v1052 = vpow.pop %v1051
    %v1053 = vmul.f32 %v1039, 1.442695
    %v1054 = vpow.pop %v1053
    %v1055 = vmul.f32 %v1040, 1.442695
    %v1056 = vpow.pop %v1055
    %1057 = vmatpush.msra.mxu0 %v728
    %1058 = vmatpush.msra.mxu0 %v727
    %1059 = vmatpush.msra.mxu0 %v726
    %1060 = vmatpush.msra.mxu0 %v725
    %1061 = vmatpush.msra.mxu0 %v724
    %1062 = vmatpush.msra.mxu0 %v723
    %1063 = vmatpush.msra.mxu0 %v722
    %1064 = vmatpush.msra.mxu0 %v721
    %1065 = vmatpush.msra.mxu0 %v720
    %1066 = vmatpush.msra.mxu0 %v719
    %1067 = vmatpush.msra.mxu0 %v718
    %1068 = vmatpush.msra.mxu0 %v717
    %1069 = vmatpush.msra.mxu0 %v716
    %1070 = vmatpush.msra.mxu0 %v715
    %1071 = vmatpush.msra.mxu0 %v714
    %1072 = vmatpush.msra.mxu0 %v713
    %1073 = vmatmul.f32.gmra.mxu0 %v1042
    %v1074 = vpop.f32.mrf.mxu0
    %v1075 = vadd.f32 0.0, %v1074
    %1076 = vmatmul.f32.gmra.mxu0 %v1046
    %v1077 = vpop.f32.mrf.mxu0
    %v1078 = vadd.f32 0.0, %v1077
    %1079 = vmatmul.f32.gmra.mxu0 %v1050
    %v1080 = vpop.f32.mrf.mxu0
    %v1081 = vadd.f32 0.0, %v1080
    %1082 = vmatmul.f32.gmra.mxu0 %v1054
    %v1083 = vpop.f32.mrf.mxu0
    %v1084 = vadd.f32 0.0, %v1083
    %1085 = vdwg.mxu0
    %1086 = vmatpush.msra.mxu0 %v744
    %1087 = vmatpush.msra.mxu0 %v743
    %1088 = vmatpush.msra.mxu0 %v742
    %1089 = vmatpush.msra.mxu0 %v741
    %1090 = vmatpush.msra.mxu0 %v740
    %1091 = vmatpush.msra.mxu0 %v739
    %1092 = vmatpush.msra.mxu0 %v738
    %1093 = vmatpush.msra.mxu0 %v737
    %1094 = vmatpush.msra.mxu0 %v736
    %1095 = vmatpush.msra.mxu0 %v735
    %1096 = vmatpush.msra.mxu0 %v734
    %1097 = vmatpush.msra.mxu0 %v733
    %1098 = vmatpush.msra.mxu0 %v732
    %1099 = vmatpush.msra.mxu0 %v731
    %1100 = vmatpush.msra.mxu0 %v730
    %1101 = vmatpush.msra.mxu0 %v729
    %1102 = vmatmul.f32.gmra.mxu0 %v1044
    %v1103 = vpop.f32.mrf.mxu0
    %v1104 = vadd.f32 %v1075, %v1103
    %1105 = vmatmul.f32.gmra.mxu0 %v1048
    %v1106 = vpop.f32.mrf.mxu0
    %v1107 = vadd.f32 %v1078, %v1106
    %1108 = vmatmul.f32.gmra.mxu0 %v1052
    %v1109 = vpop.f32.mrf.mxu0
    %v1110 = vadd.f32 %v1081, %v1109
    %1111 = vmatmul.f32.gmra.mxu0 %v1056
    %v1112 = vpop.f32.mrf.mxu0
    %v1113 = vadd.f32 %v1084, %v1112
    %1114 = vdwg.mxu0
    %v1115 = vmul.f32 %v815, %v713
    %v1116 = vmul.f32 %v818, %v714
    %v1117 = vmul.f32 %v821, %v715
    %v1118 = vmul.f32 %v824, %v716
    %v1119 = vmul.f32 %v815, %v717
    %v1120 = vmul.f32 %v818, %v718
    %v1121 = vmul.f32 %v821, %v719
    %v1122 = vmul.f32 %v824, %v720
    %v1123 = vmul.f32 %v815, %v721
    %v1124 = vmul.f32 %v818, %v722
    %v1125 = vmul.f32 %v821, %v723
    %v1126 = vmul.f32 %v824, %v724
    %v1127 = vmul.f32 %v815, %v725
    %v1128 = vmul.f32 %v818, %v726
    %v1129 = vmul.f32 %v821, %v727
    %v1130 = vmul.f32 %v824, %v728
    %v1131 = vmul.f32 %v815, %v729
    %v1132 = vmul.f32 %v818, %v730
    %v1133 = vmul.f32 %v821, %v731
    %v1134 = vmul.f32 %v824, %v732
    %v1135 = vmul.f32 %v815, %v733
    %v1136 = vmul.f32 %v818, %v734
    %v1137 = vmul.f32 %v821, %v735
    %v1138 = vmul.f32 %v824, %v736
    %v1139 = vmul.f32 %v815, %v737
    %v1140 = vmul.f32 %v818, %v738
    %v1141 = vmul.f32 %v821, %v739
    %v1142 = vmul.f32 %v824, %v740
    %v1143 = vmul.f32 %v815, %v741
    %v1144 = vmul.f32 %v818, %v742
    %v1145 = vmul.f32 %v821, %v743
    %v1146 = vmul.f32 %v824, %v744
    %1147 = vmatpush.msra.mxu0 %v1130
    %1148 = vmatpush.msra.mxu0 %v1129
    %1149 = vmatpush.msra.mxu0 %v1128
    %1150 = vmatpush.msra.mxu0 %v1127
    %1151 = vmatpush.msra.mxu0 %v1126
    %1152 = vmatpush.msra.mxu0 %v1125
    %1153 = vmatpush.msra.mxu0 %v1124
    %1154 = vmatpush.msra.mxu0 %v1123
    %1155 = vmatpush.msra.mxu0 %v1122
    %1156 = vmatpush.msra.mxu0 %v1121
    %1157 = vmatpush.msra.mxu0 %v1120
    %1158 = vmatpush.msra.mxu0 %v1119
    %1159 = vmatpush.msra.mxu0 %v1118
    %1160 = vmatpush.msra.mxu0 %v1117
    %1161 = vmatpush.msra.mxu0 %v1116
    %1162 = vmatpush.msra.mxu0 %v1115
    %1163 = vmatmul.f32.gmra.mxu0 %v1042
    %v1164 = vpop.f32.mrf.mxu0
    %v1165 = vadd.f32 0.0, %v1164
    %1166 = vmatmul.f32.gmra.mxu0 %v1046
    %v1167 = vpop.f32.mrf.mxu0
    %v1168 = vadd.f32 0.0, %v1167
    %1169 = vmatmul.f32.gmra.mxu0 %v1050
    %v1170 = vpop.f32.mrf.mxu0
    %v1171 = vadd.f32 0.0, %v1170
    %1172 = vmatmul.f32.gmra.mxu0 %v1054
    %v1173 = vpop.f32.mrf.mxu0
    %v1174 = vadd.f32 0.0, %v1173
    %1175 = vdwg.mxu0
    %1176 = vmatpush.msra.mxu0 %v1146
    %1177 = vmatpush.msra.mxu0 %v1145
    %1178 = vmatpush.msra.mxu0 %v1144
    %1179 = vmatpush.msra.mxu0 %v1143
    %1180 = vmatpush.msra.mxu0 %v1142
    %1181 = vmatpush.msra.mxu0 %v1141
    %1182 = vmatpush.msra.mxu0 %v1140
    %1183 = vmatpush.msra.mxu0 %v1139
    %1184 = vmatpush.msra.mxu0 %v1138
    %1185 = vmatpush.msra.mxu0 %v1137
    %1186 = vmatpush.msra.mxu0 %v1136
    %1187 = vmatpush.msra.mxu0 %v1135
    %1188 = vmatpush.msra.mxu0 %v1134
    %1189 = vmatpush.msra.mxu0 %v1133
    %1190 = vmatpush.msra.mxu0 %v1132
    %1191 = vmatpush.msra.mxu0 %v1131
    %1192 = vmatmul.f32.gmra.mxu0 %v1044
    %v1193 = vpop.f32.mrf.mxu0
    %v1194 = vadd.f32 %v1165, %v1193
    %1195 = vmatmul.f32.gmra.mxu0 %v1048
    %v1196 = vpop.f32.mrf.mxu0
    %v1197 = vadd.f32 %v1168, %v1196
    %1198 = vmatmul.f32.gmra.mxu0 %v1052
    %v1199 = vpop.f32.mrf.mxu0
    %v1200 = vadd.f32 %v1171, %v1199
    %1201 = vmatmul.f32.gmra.mxu0 %v1056
    %v1202 = vpop.f32.mrf.mxu0
    %v1203 = vadd.f32 %v1174, %v1202
    %1204 = vdwg.mxu0
    %v1205 = vrcp.pop %v1104
    %v1206 = vmul.f32 %v1104, %v1205
    %v1207 = vsub.f32 1.0, %v1206
    %v1208 = vmul.f32 %v1205, %v1207
    %v1209 = vadd.f32 %v1205, %v1208
    %vm1210 = vweird.f32 %v1104
    %vm1211 = vweird.f32 %v1205
    %vm1212 = vmor %vm1210, %vm1211
    %v1213 = vsel %vm1212, %v1205, %v1209
    %v1214 = vand.u32 2147483647, %v1104
    %vm1215 = vcmp.eq.f32.partialorder %v1214, 8.507059e+37
    %v1216 = vand.u32 %v1104, 2147483648
    %v1217 = vor.u32 1.1754944e-38, %v1216
    %v1218 = vsel %vm1215, %v1217, %v1213
    %v1219 = vmul.f32 %v1194, %v1218
    %v1220 = vrcp.pop %v1107
    %v1221 = vmul.f32 %v1107, %v1220
    %v1222 = vsub.f32 1.0, %v1221
    %v1223 = vmul.f32 %v1220, %v1222
    %v1224 = vadd.f32 %v1220, %v1223
    %vm1225 = vweird.f32 %v1107
    %vm1226 = vweird.f32 %v1220
    %vm1227 = vmor %vm1225, %vm1226
    %v1228 = vsel %vm1227, %v1220, %v1224
    %v1229 = vand.u32 2147483647, %v1107
    %vm1230 = vcmp.eq.f32.partialorder %v1229, 8.507059e+37
    %v1231 = vand.u32 %v1107, 2147483648
    %v1232 = vor.u32 1.1754944e-38, %v1231
    %v1233 = vsel %vm1230, %v1232, %v1228
    %v1234 = vmul.f32 %v1197, %v1233
    %v1235 = vrcp.pop %v1110
    %v1236 = vmul.f32 %v1110, %v1235
    %v1237 = vsub.f32 1.0, %v1236
    %v1238 = vmul.f32 %v1235, %v1237
    %v1239 = vadd.f32 %v1235, %v1238
    %vm1240 = vweird.f32 %v1110
    %vm1241 = vweird.f32 %v1235
    %vm1242 = vmor %vm1240, %vm1241
    %v1243 = vsel %vm1242, %v1235, %v1239
    %v1244 = vand.u32 2147483647, %v1110
    %vm1245 = vcmp.eq.f32.partialorder %v1244, 8.507059e+37
    %v1246 = vand.u32 %v1110, 2147483648
    %v1247 = vor.u32 1.1754944e-38, %v1246
    %v1248 = vsel %vm1245, %v1247, %v1243
    %v1249 = vmul.f32 %v1200, %v1248
    %v1250 = vrcp.pop %v1113
    %v1251 = vmul.f32 %v1113, %v1250
    %v1252 = vsub.f32 1.0, %v1251
    %v1253 = vmul.f32 %v1250, %v1252
    %v1254 = vadd.f32 %v1250, %v1253
    %vm1255 = vweird.f32 %v1113
    %vm1256 = vweird.f32 %v1250
    %vm1257 = vmor %vm1255, %vm1256
    %v1258 = vsel %vm1257, %v1250, %v1254
    %v1259 = vand.u32 2147483647, %v1113
    %vm1260 = vcmp.eq.f32.partialorder %v1259, 8.507059e+37
    %v1261 = vand.u32 %v1113, 2147483648
    %v1262 = vor.u32 1.1754944e-38, %v1261
    %v1263 = vsel %vm1260, %v1262, %v1258
    %v1264 = vmul.f32 %v1203, %v1263
    %v1265 = vld [vmem:[#allocation4 + $0x4d0] sm:$0xff]
    %v1266 = vld [vmem:[#allocation4 + $0x4e0] sm:$0xff]
    %v1267 = vld [vmem:[#allocation4 + $0x4f0] sm:$0xff]
    %v1268 = vld [vmem:[#allocation4 + $0x500] sm:$0xff]
    %v1269 = vld [vmem:[#allocation4 + $0x510] sm:$0xff]
    %v1270 = vld [vmem:[#allocation4 + $0x520] sm:$0xff]
    %v1272 = vsel %vm826, %v1219, 0
    %v1275 = vsel %vm826, %v1234, 0
    %v1278 = vsel %vm826, %v1249, 0
    %v1281 = vsel %vm826, %v1264, 0
    %1283 = vmatpush.msra.mxu0 0.0
    %1284 = vmatpush.msra.mxu0 0.0
    %1285 = vmatpush.msra.mxu0 0.0
    %1286 = vmatpush.msra.mxu0 0.0
    %1287 = vmatpush.msra.mxu0 0.0
    %1288 = vmatpush.msra.mxu0 0.0
    %1289 = vmatpush.msra.mxu0 0.0
    %1290 = vmatpush.msra.mxu0 0.0
    %1291 = vmatpush.msra.mxu0 0.0
    %1292 = vmatpush.msra.mxu0 0.0
    %1293 = vmatpush.msra.mxu0 %v1270
    %1294 = vmatpush.msra.mxu0 %v1269
    %1295 = vmatpush.msra.mxu0 %v1268
    %1296 = vmatpush.msra.mxu0 %v1267
    %1297 = vmatpush.msra.mxu0 %v1266
    %1298 = vmatpush.msra.mxu0 %v1265
    %1299 = vmatmul.f32.gmra.mxu0 %v1272
    %v1300 = vpop.f32.mrf.mxu0
    %v1301 = vadd.f32 %v712, %v1300
    %1302 = vmatmul.f32.gmra.mxu0 %v1275
    %v1303 = vpop.f32.mrf.mxu0
    %v1304 = vadd.f32 %v712, %v1303
    %1305 = vmatmul.f32.gmra.mxu0 %v1278
    %v1306 = vpop.f32.mrf.mxu0
    %v1307 = vadd.f32 %v712, %v1306
    %1308 = vmatmul.f32.gmra.mxu0 %v1281
    %v1309 = vpop.f32.mrf.mxu0
    %v1310 = vadd.f32 %v712, %v1309
    %1311 = vdwg.mxu0
    %vm1312 = vcmask 64512
    %1313 = vst.msk [vmem:[%s3] sm:$0xff] %vm1312, %v1301
    %1314 = vst.msk [vmem:[%s3 + $0x8] sm:$0xff] %vm1312, %v1304
    %1315 = vst.msk [vmem:[%s3 + $0x10] sm:$0xff] %vm1312, %v1307
    %1316 = vst.msk [vmem:[%s3 + $0x18] sm:$0xff] %vm1312, %v1310
    // Predicated region
    $region22: #{tpu_custom_call.1} parent=1 // pred_check
      _
    $region23: #{tpu_custom_call.1} parent=1 // pred_check_branch
      %1318 = sbr.rel (0) target = $region25
    $region24: #{tpu_custom_call.1} parent=1 // pred_region
      _
    $region25: #{tpu_custom_call.1} parent=1 // pred_fallthru
      _
    // Predicated region
    $region26: #{tpu_custom_call.1} parent=1 // pred_check
      _
    $region27: #{tpu_custom_call.1} parent=1 // pred_check_branch
      %1320 = sbr.rel (0) target = $region29
    $region28: #{tpu_custom_call.1} parent=1 // pred_region
      _
    $region29: #{tpu_custom_call.1} parent=1 // pred_fallthru
      _
    %1321 = vsyncpa [#allocation3], 1
    %1322 = vsyncpa [#allocation5], 1

</llo_original>
